<compile_context>
chip_gen: v7x
topology: tpu7x:2x2x1
jax: 0.10.0
libtpu: 0.0.40
codegen_flags: <defaults>
</compile_context>

<pallas_src>
from dataclasses import dataclass

import numpy as np
import jax
import jax.numpy as jnp
from jax.experimental import pallas as pl
from jax.experimental.pallas import tpu as pltpu


LANE = 128
SUBLANE = 8


@dataclass(frozen=True)
class Config:
    mask_prob: float
    mask_time: float
    input_feature_size: int
    stride_time: float
    code_book_size: int
    num_code_books: int
    num_temporal_dimension_reduction_steps: int
    encoder_hidden_size: int


# ------------------------------ small helpers ------------------------------

def _round_up(a, b):
    return ((a + b - 1) // b) * b


def _pad_axis(x, target, axis):
    pad = target - x.shape[axis]
    if pad <= 0:
        return x
    widths = [(0, 0)] * x.ndim
    widths[axis] = (0, pad)
    return jnp.pad(x, widths)


# ------------------------------ Pallas kernel -------------------------------

def _bestrq_masked_kernel(x_ref, g_ref, b_ref, wproj_ref, cb_ref, cbsq_ref,
                          noise_ref, w1_ref, b1_ref, w2_ref, b2_ref,
                          labels_ref, targets_ref):
    """Fused quantizer + (encoder -> out_linear) on one tile of masked rows.

    x_ref:       (K, Nt, D)   raw gathered masked rows, f32
    g_ref/b_ref: (1, D)       LayerNorm gamma / beta
    wproj_ref:   (K, D, Cp)   random projection weight (reshaped, lane-padded)
    cb_ref:      (Msub, Cp)   sublane/lane-padded codebook
    cbsq_ref:    (1, Msub)    codebook squared norms (+1e30 on padded cols)
    noise_ref:   (Nt, KDp)    N(0,0.1) noise rows, bf16, lane-padded
    w1/b1:       (KDp, Hp) bf16 / (1, Hp) f32   synthetic encoder linear
    w2/b2:       (Hp, Mp) bf16 / (1, Mp) f32    out_linear
    labels_ref:  (Nt, 1)      int32 labels
    targets_ref: (Nt, Mp)     f32 projected targets (lane-dense store)
    """
    d = x_ref.shape[-1]
    gamma = g_ref[...].reshape(1, d)
    beta = b_ref[...].reshape(1, d)

    # ---- quantizer path (f32) -------------------------------------------
    # LayerNorm per K-chunk + random projection, accumulated over K.
    t = None
    for k in range(x_ref.shape[0]):
        xk = x_ref[k]                                     # (Nt, D)
        mean = jnp.mean(xk, axis=-1, keepdims=True)
        xc = xk - mean
        var = jnp.mean(xc * xc, axis=-1, keepdims=True)
        xk_ln = xc * jax.lax.rsqrt(var + 1e-5) * gamma + beta   # torch LN eps
        pk = jnp.dot(xk_ln, wproj_ref[k], preferred_element_type=jnp.float32)
        t = pk if t is None else t + pk                   # (Nt, Cp)

    # squared distances; per-row |t|^2 is argmin-invariant and dropped.
    cross = jax.lax.dot_general(
        t, cb_ref[...], (((1,), (1,)), ((), ())),
        preferred_element_type=jnp.float32)               # (Nt, Msub)
    dist = cbsq_ref[...] - 2.0 * cross                    # (Nt, Msub)
    min_d = jnp.min(dist, axis=-1, keepdims=True)
    ids = jax.lax.broadcasted_iota(jnp.int32, dist.shape, 1)
    labels_ref[...] = jnp.min(
        jnp.where(dist == min_d, ids, dist.shape[1]),
        axis=-1, keepdims=True)                           # first argmin, (Nt,1)

    # ---- encoder + out_linear path (bf16 MXU, f32 acc) --------------------
    h = jnp.dot(noise_ref[...], w1_ref[...],
                preferred_element_type=jnp.float32) + b1_ref[...]
    targets_ref[...] = jnp.dot(h.astype(jnp.bfloat16), w2_ref[...],
                               preferred_element_type=jnp.float32) + b2_ref[...]


def run_masked_rows(x_sel_kld, gamma, beta, w_proj_p, cb_p, cb_sq_p,
                    noise_p, w_enc_p, b_enc_p, w_out_p, b_out_p, n_tile):
    K, n_pad, d = x_sel_kld.shape
    cp = w_proj_p.shape[-1]
    msub = cb_p.shape[0]
    kdp = noise_p.shape[-1]
    hp = w_enc_p.shape[1]
    mp = w_out_p.shape[1]
    grid = (n_pad // n_tile,)

    labels, targets = pl.pallas_call(
        _bestrq_masked_kernel,
        out_shape=(jax.ShapeDtypeStruct((n_pad, 1), jnp.int32),
                   jax.ShapeDtypeStruct((n_pad, mp), jnp.float32)),
        grid=grid,
        in_specs=[
            pl.BlockSpec((K, n_tile, d), lambda i: (0, i, 0)),
            pl.BlockSpec((1, d), lambda i: (0, 0)),
            pl.BlockSpec((1, d), lambda i: (0, 0)),
            pl.BlockSpec((K, d, cp), lambda i: (0, 0, 0)),
            pl.BlockSpec((msub, cp), lambda i: (0, 0)),
            pl.BlockSpec((1, msub), lambda i: (0, 0)),
            pl.BlockSpec((n_tile, kdp), lambda i: (i, 0)),
            pl.BlockSpec((kdp, hp), lambda i: (0, 0)),
            pl.BlockSpec((1, hp), lambda i: (0, 0)),
            pl.BlockSpec((hp, mp), lambda i: (0, 0)),
            pl.BlockSpec((1, mp), lambda i: (0, 0)),
        ],
        out_specs=[
            pl.BlockSpec((n_tile, 1), lambda i: (i, 0)),
            pl.BlockSpec((n_tile, mp), lambda i: (i, 0)),
        ],
        compiler_params=pltpu.CompilerParams(
            dimension_semantics=("parallel",)),
    )(x_sel_kld, gamma.reshape(1, d), beta.reshape(1, d),
      w_proj_p, cb_p, cb_sq_p, noise_p, w_enc_p, b_enc_p, w_out_p, b_out_p)
    return labels.reshape(-1), targets


# ------------------------------- parameters --------------------------------

def init_params(cfg: Config, key):
    D = cfg.input_feature_size
    K = cfg.num_temporal_dimension_reduction_steps
    KD, C = K * D, cfg.code_book_size
    M, H = cfg.num_code_books, cfg.encoder_hidden_size
    KDp, Cp = _round_up(KD, LANE), _round_up(C, LANE)
    Msub = _round_up(M, SUBLANE)          # codebook rows only need sublane pad
    Hp, Moutp = _round_up(H, LANE), _round_up(M, LANE)

    k1, k2, k3, k4, k5 = jax.random.split(key, 5)
    xavier = float(np.sqrt(6.0 / (KD + C)))

    w_proj = jax.random.uniform(k1, (KD, C), jnp.float32, -xavier, xavier)
    code_book = jax.random.normal(k2, (M, C), jnp.float32)
    w_enc = jax.random.uniform(k3, (KD, H), jnp.float32, -1.0, 1.0) / np.sqrt(KD)
    b_enc = jnp.zeros((H,), jnp.float32)
    w_out = jax.random.uniform(k4, (H, M), jnp.float32, -1.0, 1.0) / np.sqrt(H)
    b_out = jax.random.uniform(k5, (M,), jnp.float32, -1.0, 1.0) / np.sqrt(H)

    # lane/sublane-pad & dtype-prep kernel operands once on the host.
    w_proj_p = _pad_axis(w_proj.reshape(K, D, C), Cp, 2)            # (K,D,Cp) f32
    cb_p = _pad_axis(_pad_axis(code_book, Cp, 1), Msub, 0)          # (Msub,Cp) f32
    cb_sq = jnp.sum(code_book * code_book, axis=-1).reshape(1, M)   # (1,M)
    if Msub > M:
        cb_sq_p = jnp.concatenate(
            [cb_sq, jnp.full((1, Msub - M), 1e30, jnp.float32)], axis=1)
    else:
        cb_sq_p = cb_sq                                              # (1,Msub)
    w_enc_p = _pad_axis(_pad_axis(w_enc, Hp, 1), KDp, 0).astype(jnp.bfloat16)
    b_enc_p = _pad_axis(b_enc.reshape(1, H), Hp, 1)
    w_out_p = _pad_axis(_pad_axis(w_out, Moutp, 1), Hp, 0).astype(jnp.bfloat16)
    b_out_p = _pad_axis(b_out.reshape(1, M), Moutp, 1)

    return dict(
        ln_gamma=jnp.ones((D,), jnp.float32),
        ln_beta=jnp.zeros((D,), jnp.float32),
        w_proj_p=w_proj_p, cb_p=cb_p, cb_sq_p=cb_sq_p,
        w_enc_p=w_enc_p, b_enc_p=b_enc_p,
        w_out_p=w_out_p, b_out_p=b_out_p,
    )


# -------------------------- host-side time masking -------------------------
# TODO(synk): the reference uses python `random.sample`; reproduced host-side
# with numpy (stochastic masking has no Pallas equivalent).

def make_time_mask(input_lengths, L, K, num_time_steps, mask_prob, seed=0):
    rng = np.random.RandomState(seed)
    B = len(input_lengths)
    mask = np.zeros((B, L + num_time_steps), dtype=bool)
    for b in range(B):
        qlen = int(input_lengths[b]) // K - 1        # quantized_input_lengths
        k = int(mask_prob * qlen)
        if k > 0:
            starts = rng.choice(np.arange(qlen), size=k, replace=False)
            for i in range(num_time_steps):
                mask[b, starts + i] = True
    return mask[:, :-num_time_steps] if num_time_steps > 0 else mask


# ------------------------------ forward pass --------------------------------

def best_rq_forward(params, cfg: Config, input_values, input_lengths_np,
                    rng_seed=0):
    B, T, D = input_values.shape
    K = cfg.num_temporal_dimension_reduction_steps
    M = cfg.num_code_books
    KD = K * D
    KDp = _round_up(KD, LANE)

    # pad T up to a multiple of K (raw zeros; LayerNorm is fused downstream —
    # with the default beta=0 this matches the reference's post-LN padding).
    # TODO(synk): with a non-zero LayerNorm beta, a masked row overlapping the
    # T-padding would differ slightly from the reference (pad pre- vs post-LN).
    x = input_values
    if T % K != 0:
        T_new = (T // K + 1) * K
        x = jnp.concatenate([x, jnp.zeros((B, T_new - T, D), jnp.float32)],
                            axis=1)
        T = T_new
    L = T // K

    # static masked-row budget: pad to B*L rounded to the row tile so shapes
    # never depend on the random mask / input_lengths (no recompiles).
    n_tile = 256 if B * L >= 256 else 128
    n_pad = _round_up(max(B * L, 1), n_tile)

    # host-side stochastic time masking (python `random` in the reference)
    num_time_steps = int(cfg.mask_time // (cfg.stride_time * K))
    mask = make_time_mask(input_lengths_np, L, K, num_time_steps,
                          cfg.mask_prob, seed=rng_seed)
    idx_np = np.nonzero(mask.reshape(-1))[0]
    N = int(idx_np.size)
    idx_pad = np.zeros((n_pad,), np.int32)
    idx_pad[:N] = idx_np
    idx = jnp.asarray(idx_pad)

    # gather RAW rows at masked positions; LayerNorm runs inside the fused
    # kernel => no full-sequence LayerNorm HBM round trip.
    x_rows = x.reshape(B * L, K, D)
    x_sel = jnp.transpose(jnp.take(x_rows, idx, axis=0), (1, 0, 2))  # (K,n_pad,D)

    # masked rows are fully replaced by N(0, 0.1) noise, and the encoder output
    # is only read at masked rows, so encoder + out_linear run only on them.
    # TODO(synk): the PyTorch module takes an arbitrary external `encoder`;
    # here it is synthesized as a per-row linear K*D -> H temporal reducer
    # (a context-mixing encoder would need the full masked sequence).
    noise = 0.1 * jax.random.normal(jax.random.PRNGKey(rng_seed + 1),
                                    (n_pad, KD), jnp.float32)
    noise_p = _pad_axis(noise, KDp, 1).astype(jnp.bfloat16)

    labels_full, targets_full = run_masked_rows(
        x_sel, params["ln_gamma"], params["ln_beta"],
        params["w_proj_p"], params["cb_p"], params["cb_sq_p"],
        noise_p, params["w_enc_p"], params["b_enc_p"],
        params["w_out_p"], params["b_out_p"], n_tile)

    targets_out = targets_full[:N, :M]
    labels = labels_full[:N]
    return targets_out, labels


# ----------------------------------- main -----------------------------------

if __name__ == "__main__":
    cfg = Config(
        mask_prob=0.5,
        mask_time=0.04,
        input_feature_size=32,
        stride_time=0.01,
        code_book_size=64,
        num_code_books=8,
        num_temporal_dimension_reduction_steps=2,
        encoder_hidden_size=32,
    )

    key = jax.random.PRNGKey(0)
    pkey, xkey = jax.random.split(key)
    params = init_params(cfg, pkey)

    B, T, D = 2, 16, cfg.input_feature_size
    input_values = jax.random.normal(xkey, (B, T, D), jnp.float32)
    input_lengths = np.array([16, 12], dtype=np.int64)

    targets_out, labels = best_rq_forward(params, cfg, input_values,
                                          input_lengths, rng_seed=0)
    jax.block_until_ready((targets_out, labels))

    assert targets_out.shape[1] == cfg.num_code_books
    assert labels.shape[0] == targets_out.shape[0]
    if labels.size:
        assert int(jnp.min(labels)) >= 0
        assert int(jnp.max(labels)) < cfg.num_code_books
    print("KERNEL_OK")
</pallas_src>

<mosaic_0001>
module attributes {stable_mosaic.version = 11 : i64} {
  func.func @_bestrq_masked_kernel(%arg0: i32, %arg1: memref<2x128x32xf32, #tpu.memory_space<vmem>>, %arg2: memref<1x32xf32, #tpu.memory_space<vmem>>, %arg3: memref<1x32xf32, #tpu.memory_space<vmem>>, %arg4: memref<2x32x128xf32, #tpu.memory_space<vmem>>, %arg5: memref<8x128xf32, #tpu.memory_space<vmem>>, %arg6: memref<1x8xf32, #tpu.memory_space<vmem>>, %arg7: memref<128x128xbf16, #tpu.memory_space<vmem>>, %arg8: memref<128x128xbf16, #tpu.memory_space<vmem>>, %arg9: memref<1x128xf32, #tpu.memory_space<vmem>>, %arg10: memref<128x128xbf16, #tpu.memory_space<vmem>>, %arg11: memref<1x128xf32, #tpu.memory_space<vmem>>, %arg12: memref<128x1xi32, #tpu.memory_space<vmem>>, %arg13: memref<128x128xf32, #tpu.memory_space<vmem>>) attributes {dimension_semantics = [#tpu.dimension_semantics<parallel>], iteration_bounds = array<i64: 1>, scalar_prefetch = 0 : i64, scratch_operands = 0 : i64, tpu.core_type = #tpu.core_type<tc>, window_params = [{transform_indices = @transform_0, window_bounds = array<i64: 2, 128, 32>}, {pipeline_mode = #tpu.pipeline_mode<synchronous>, transform_indices = @transform_1, window_bounds = array<i64: 1, 32>}, {pipeline_mode = #tpu.pipeline_mode<synchronous>, transform_indices = @transform_2, window_bounds = array<i64: 1, 32>}, {pipeline_mode = #tpu.pipeline_mode<synchronous>, transform_indices = @transform_3, window_bounds = array<i64: 2, 32, 128>}, {pipeline_mode = #tpu.pipeline_mode<synchronous>, transform_indices = @transform_4, window_bounds = array<i64: 8, 128>}, {pipeline_mode = #tpu.pipeline_mode<synchronous>, transform_indices = @transform_5, window_bounds = array<i64: 1, 8>}, {transform_indices = @transform_6, window_bounds = array<i64: 128, 128>}, {pipeline_mode = #tpu.pipeline_mode<synchronous>, transform_indices = @transform_7, window_bounds = array<i64: 128, 128>}, {pipeline_mode = #tpu.pipeline_mode<synchronous>, transform_indices = @transform_8, window_bounds = array<i64: 1, 128>}, {pipeline_mode = #tpu.pipeline_mode<synchronous>, transform_indices = @transform_9, window_bounds = array<i64: 128, 128>}, {pipeline_mode = #tpu.pipeline_mode<synchronous>, transform_indices = @transform_10, window_bounds = array<i64: 1, 128>}, {transform_indices = @transform_11, window_bounds = array<i64: 128, 1>}, {transform_indices = @transform_12, window_bounds = array<i64: 128, 128>}]} {
    %c0 = arith.constant 0 : index
    %c0_0 = arith.constant 0 : index
    %0 = vector.load %arg2[%c0, %c0_0] : memref<1x32xf32, #tpu.memory_space<vmem>>, vector<1x32xf32>
    %c0_1 = arith.constant 0 : index
    %c0_2 = arith.constant 0 : index
    %1 = vector.load %arg3[%c0_1, %c0_2] : memref<1x32xf32, #tpu.memory_space<vmem>>, vector<1x32xf32>
    %c0_3 = arith.constant 0 : index
    %c0_4 = arith.constant 0 : index
    %c0_5 = arith.constant 0 : index
    %2 = vector.load %arg1[%c0_3, %c0_4, %c0_5] : memref<2x128x32xf32, #tpu.memory_space<vmem>>, vector<1x128x32xf32>
    %3 = vector.shape_cast %2 : vector<1x128x32xf32> to vector<128x32xf32>
    %cst = arith.constant dense<0.000000e+00> : vector<128xf32>
    %4 = vector.multi_reduction <add>, %3, %cst [1] : vector<128x32xf32> to vector<128xf32>
    %5 = vector.shape_cast %4 : vector<128xf32> to vector<128x1xf32>
    %cst_6 = arith.constant 3.200000e+01 : f32
    %6 = vector.broadcast %cst_6 : f32 to vector<128x1xf32>
    %7 = arith.divf %5, %6 : vector<128x1xf32>
    %8 = vector.broadcast %7 : vector<128x1xf32> to vector<128x32xf32>
    %9 = arith.subf %3, %8 : vector<128x32xf32>
    %10 = arith.mulf %9, %9 : vector<128x32xf32>
    %cst_7 = arith.constant dense<0.000000e+00> : vector<128xf32>
    %11 = vector.multi_reduction <add>, %10, %cst_7 [1] : vector<128x32xf32> to vector<128xf32>
    %12 = vector.shape_cast %11 : vector<128xf32> to vector<128x1xf32>
    %cst_8 = arith.constant 3.200000e+01 : f32
    %13 = vector.broadcast %cst_8 : f32 to vector<128x1xf32>
    %14 = arith.divf %12, %13 : vector<128x1xf32>
    %cst_9 = arith.constant 9.99999974E-6 : f32
    %15 = vector.broadcast %cst_9 : f32 to vector<128x1xf32>
    %16 = arith.addf %14, %15 : vector<128x1xf32>
    %17 = math.rsqrt %16 : vector<128x1xf32>
    %18 = vector.broadcast %17 : vector<128x1xf32> to vector<128x32xf32>
    %19 = arith.mulf %9, %18 : vector<128x32xf32>
    %20 = vector.broadcast %0 : vector<1x32xf32> to vector<128x32xf32>
    %21 = arith.mulf %19, %20 : vector<128x32xf32>
    %22 = vector.broadcast %1 : vector<1x32xf32> to vector<128x32xf32>
    %23 = arith.addf %21, %22 : vector<128x32xf32>
    %c0_10 = arith.constant 0 : index
    %c0_11 = arith.constant 0 : index
    %c0_12 = arith.constant 0 : index
    %24 = vector.load %arg4[%c0_10, %c0_11, %c0_12] : memref<2x32x128xf32, #tpu.memory_space<vmem>>, vector<1x32x128xf32>
    %25 = vector.shape_cast %24 : vector<1x32x128xf32> to vector<32x128xf32>
    %cst_13 = arith.constant dense<0.000000e+00> : vector<128x128xf32>
    %26 = tpu.matmul %23, %25, %cst_13 {dimension_numbers = #tpu.dot_dimension_numbers<[1], [0], [0], [1], [0, 0, 1, 1], [], []>} : vector<128x32xf32>, vector<32x128xf32>, vector<128x128xf32> -> vector<128x128xf32>
    %c1 = arith.constant 1 : index
    %c0_14 = arith.constant 0 : index
    %c0_15 = arith.constant 0 : index
    %27 = vector.load %arg1[%c1, %c0_14, %c0_15] : memref<2x128x32xf32, #tpu.memory_space<vmem>>, vector<1x128x32xf32>
    %28 = vector.shape_cast %27 : vector<1x128x32xf32> to vector<128x32xf32>
    %cst_16 = arith.constant dense<0.000000e+00> : vector<128xf32>
    %29 = vector.multi_reduction <add>, %28, %cst_16 [1] : vector<128x32xf32> to vector<128xf32>
    %30 = vector.shape_cast %29 : vector<128xf32> to vector<128x1xf32>
    %cst_17 = arith.constant 3.200000e+01 : f32
    %31 = vector.broadcast %cst_17 : f32 to vector<128x1xf32>
    %32 = arith.divf %30, %31 : vector<128x1xf32>
    %33 = vector.broadcast %32 : vector<128x1xf32> to vector<128x32xf32>
    %34 = arith.subf %28, %33 : vector<128x32xf32>
    %35 = arith.mulf %34, %34 : vector<128x32xf32>
    %cst_18 = arith.constant dense<0.000000e+00> : vector<128xf32>
    %36 = vector.multi_reduction <add>, %35, %cst_18 [1] : vector<128x32xf32> to vector<128xf32>
    %37 = vector.shape_cast %36 : vector<128xf32> to vector<128x1xf32>
    %cst_19 = arith.constant 3.200000e+01 : f32
    %38 = vector.broadcast %cst_19 : f32 to vector<128x1xf32>
    %39 = arith.divf %37, %38 : vector<128x1xf32>
    %cst_20 = arith.constant 9.99999974E-6 : f32
    %40 = vector.broadcast %cst_20 : f32 to vector<128x1xf32>
    %41 = arith.addf %39, %40 : vector<128x1xf32>
    %42 = math.rsqrt %41 : vector<128x1xf32>
    %43 = vector.broadcast %42 : vector<128x1xf32> to vector<128x32xf32>
    %44 = arith.mulf %34, %43 : vector<128x32xf32>
    %45 = vector.broadcast %0 : vector<1x32xf32> to vector<128x32xf32>
    %46 = arith.mulf %44, %45 : vector<128x32xf32>
    %47 = vector.broadcast %1 : vector<1x32xf32> to vector<128x32xf32>
    %48 = arith.addf %46, %47 : vector<128x32xf32>
    %c1_21 = arith.constant 1 : index
    %c0_22 = arith.constant 0 : index
    %c0_23 = arith.constant 0 : index
    %49 = vector.load %arg4[%c1_21, %c0_22, %c0_23] : memref<2x32x128xf32, #tpu.memory_space<vmem>>, vector<1x32x128xf32>
    %50 = vector.shape_cast %49 : vector<1x32x128xf32> to vector<32x128xf32>
    %cst_24 = arith.constant dense<0.000000e+00> : vector<128x128xf32>
    %51 = tpu.matmul %48, %50, %cst_24 {dimension_numbers = #tpu.dot_dimension_numbers<[1], [0], [0], [1], [0, 0, 1, 1], [], []>} : vector<128x32xf32>, vector<32x128xf32>, vector<128x128xf32> -> vector<128x128xf32>
    %52 = arith.addf %26, %51 : vector<128x128xf32>
    %c0_25 = arith.constant 0 : index
    %c0_26 = arith.constant 0 : index
    %53 = vector.load %arg5[%c0_25, %c0_26] : memref<8x128xf32, #tpu.memory_space<vmem>>, vector<8x128xf32>
    %cst_27 = arith.constant dense<0.000000e+00> : vector<128x8xf32>
    %54 = tpu.matmul %52, %53, %cst_27 {dimension_numbers = #tpu.dot_dimension_numbers<[1], [1], [0], [0], [0, 0, 1, 0], [], []>} : vector<128x128xf32>, vector<8x128xf32>, vector<128x8xf32> -> vector<128x8xf32>
    %c0_28 = arith.constant 0 : index
    %c0_29 = arith.constant 0 : index
    %55 = vector.load %arg6[%c0_28, %c0_29] : memref<1x8xf32, #tpu.memory_space<vmem>>, vector<1x8xf32>
    %cst_30 = arith.constant 2.000000e+00 : f32
    %56 = vector.broadcast %cst_30 : f32 to vector<128x8xf32>
    %57 = arith.mulf %56, %54 : vector<128x8xf32>
    %58 = vector.broadcast %55 : vector<1x8xf32> to vector<128x8xf32>
    %59 = arith.subf %58, %57 : vector<128x8xf32>
    %cst_31 = arith.constant dense<0x7F800000> : vector<128xf32>
    %60 = vector.multi_reduction <minimumf>, %59, %cst_31 [1] : vector<128x8xf32> to vector<128xf32>
    %61 = vector.shape_cast %60 : vector<128xf32> to vector<128x1xf32>
    %62 = tpu.iota {dimensions = array<i32: 1>} : vector<128x8xi32>
    %63 = vector.broadcast %61 : vector<128x1xf32> to vector<128x8xf32>
    %64 = arith.cmpf oeq, %59, %63 : vector<128x8xf32>
    %c8_i32 = arith.constant 8 : i32
    %65 = vector.broadcast %c8_i32 : i32 to vector<128x8xi32>
    %66 = arith.select %64, %62, %65 : vector<128x8xi1>, vector<128x8xi32>
    %cst_32 = arith.constant dense<2147483647> : vector<128xi32>
    %67 = vector.multi_reduction <minsi>, %66, %cst_32 [1] : vector<128x8xi32> to vector<128xi32>
    %68 = vector.shape_cast %67 : vector<128xi32> to vector<128x1xi32>
    %c0_33 = arith.constant 0 : index
    %c0_34 = arith.constant 0 : index
    %69 = vector.load %arg12[%c0_33, %c0_34] : memref<128x1xi32, #tpu.memory_space<vmem>>, vector<128x1xi32>
    tpu.vector_store %arg12[%c0_33, %c0_34], %68 {strides = array<i32>} : memref<128x1xi32, #tpu.memory_space<vmem>>, vector<128x1xi32>,
    %c0_35 = arith.constant 0 : index
    %c0_36 = arith.constant 0 : index
    %70 = vector.load %arg7[%c0_35, %c0_36] : memref<128x128xbf16, #tpu.memory_space<vmem>>, vector<128x128xbf16>
    %c0_37 = arith.constant 0 : index
    %c0_38 = arith.constant 0 : index
    %71 = vector.load %arg8[%c0_37, %c0_38] : memref<128x128xbf16, #tpu.memory_space<vmem>>, vector<128x128xbf16>
    %cst_39 = arith.constant dense<0.000000e+00> : vector<128x128xf32>
    %72 = tpu.matmul %70, %71, %cst_39 {dimension_numbers = #tpu.dot_dimension_numbers<[1], [0], [0], [1], [0, 0, 1, 1], [], []>} : vector<128x128xbf16>, vector<128x128xbf16>, vector<128x128xf32> -> vector<128x128xf32>
    %c0_40 = arith.constant 0 : index
    %c0_41 = arith.constant 0 : index
    %73 = vector.load %arg9[%c0_40, %c0_41] : memref<1x128xf32, #tpu.memory_space<vmem>>, vector<1x128xf32>
    %74 = vector.broadcast %73 : vector<1x128xf32> to vector<128x128xf32>
    %75 = arith.addf %72, %74 : vector<128x128xf32>
    %76 = arith.truncf %75 : vector<128x128xf32> to vector<128x128xbf16>
    %c0_42 = arith.constant 0 : index
    %c0_43 = arith.constant 0 : index
    %77 = vector.load %arg10[%c0_42, %c0_43] : memref<128x128xbf16, #tpu.memory_space<vmem>>, vector<128x128xbf16>
    %cst_44 = arith.constant dense<0.000000e+00> : vector<128x128xf32>
    %78 = tpu.matmul %76, %77, %cst_44 {dimension_numbers = #tpu.dot_dimension_numbers<[1], [0], [0], [1], [0, 0, 1, 1], [], []>} : vector<128x128xbf16>, vector<128x128xbf16>, vector<128x128xf32> -> vector<128x128xf32>
    %c0_45 = arith.constant 0 : index
    %c0_46 = arith.constant 0 : index
    %79 = vector.load %arg11[%c0_45, %c0_46] : memref<1x128xf32, #tpu.memory_space<vmem>>, vector<1x128xf32>
    %80 = vector.broadcast %79 : vector<1x128xf32> to vector<128x128xf32>
    %81 = arith.addf %78, %80 : vector<128x128xf32>
    %c0_47 = arith.constant 0 : index
    %c0_48 = arith.constant 0 : index
    %82 = vector.load %arg13[%c0_47, %c0_48] : memref<128x128xf32, #tpu.memory_space<vmem>>, vector<128x128xf32>
    tpu.vector_store %arg13[%c0_47, %c0_48], %81 {strides = array<i32>} : memref<128x128xf32, #tpu.memory_space<vmem>>, vector<128x128xf32>,
    return
  }
  func.func @transform_0(%arg0: i32) -> (i32, i32, i32) {
    %c0_i32 = arith.constant 0 : i32
    %c0_i32_0 = arith.constant 0 : i32
    %c0_i32_1 = arith.constant 0 : i32
    return %c0_i32, %arg0, %c0_i32_0 : i32, i32, i32
  }
  func.func @transform_1(%arg0: i32) -> (i32, i32) {
    %c0_i32 = arith.constant 0 : i32
    %c0_i32_0 = arith.constant 0 : i32
    %c0_i32_1 = arith.constant 0 : i32
    return %c0_i32, %c0_i32_0 : i32, i32
  }
  func.func @transform_2(%arg0: i32) -> (i32, i32) {
    %c0_i32 = arith.constant 0 : i32
    %c0_i32_0 = arith.constant 0 : i32
    %c0_i32_1 = arith.constant 0 : i32
    return %c0_i32, %c0_i32_0 : i32, i32
  }
  func.func @transform_3(%arg0: i32) -> (i32, i32, i32) {
    %c0_i32 = arith.constant 0 : i32
    %c0_i32_0 = arith.constant 0 : i32
    %c0_i32_1 = arith.constant 0 : i32
    %c0_i32_2 = arith.constant 0 : i32
    return %c0_i32, %c0_i32_0, %c0_i32_1 : i32, i32, i32
  }
  func.func @transform_4(%arg0: i32) -> (i32, i32) {
    %c0_i32 = arith.constant 0 : i32
    %c0_i32_0 = arith.constant 0 : i32
    %c0_i32_1 = arith.constant 0 : i32
    return %c0_i32, %c0_i32_0 : i32, i32
  }
  func.func @transform_5(%arg0: i32) -> (i32, i32) {
    %c0_i32 = arith.constant 0 : i32
    %c0_i32_0 = arith.constant 0 : i32
    %c0_i32_1 = arith.constant 0 : i32
    return %c0_i32, %c0_i32_0 : i32, i32
  }
  func.func @transform_6(%arg0: i32) -> (i32, i32) {
    %c0_i32 = arith.constant 0 : i32
    %c0_i32_0 = arith.constant 0 : i32
    return %arg0, %c0_i32 : i32, i32
  }
  func.func @transform_7(%arg0: i32) -> (i32, i32) {
    %c0_i32 = arith.constant 0 : i32
    %c0_i32_0 = arith.constant 0 : i32
    %c0_i32_1 = arith.constant 0 : i32
    return %c0_i32, %c0_i32_0 : i32, i32
  }
  func.func @transform_8(%arg0: i32) -> (i32, i32) {
    %c0_i32 = arith.constant 0 : i32
    %c0_i32_0 = arith.constant 0 : i32
    %c0_i32_1 = arith.constant 0 : i32
    return %c0_i32, %c0_i32_0 : i32, i32
  }
  func.func @transform_9(%arg0: i32) -> (i32, i32) {
    %c0_i32 = arith.constant 0 : i32
    %c0_i32_0 = arith.constant 0 : i32
    %c0_i32_1 = arith.constant 0 : i32
    return %c0_i32, %c0_i32_0 : i32, i32
  }
  func.func @transform_10(%arg0: i32) -> (i32, i32) {
    %c0_i32 = arith.constant 0 : i32
    %c0_i32_0 = arith.constant 0 : i32
    %c0_i32_1 = arith.constant 0 : i32
    return %c0_i32, %c0_i32_0 : i32, i32
  }
  func.func @transform_11(%arg0: i32) -> (i32, i32) {
    %c0_i32 = arith.constant 0 : i32
    %c0_i32_0 = arith.constant 0 : i32
    return %arg0, %c0_i32 : i32, i32
  }
  func.func @transform_12(%arg0: i32) -> (i32, i32) {
    %c0_i32 = arith.constant 0 : i32
    %c0_i32_0 = arith.constant 0 : i32
    return %arg0, %c0_i32 : i32, i32
  }
}

</mosaic_0001>

<llo_original>
// kernel: tpu_custom_call.1
$region0: #{tpu_custom_call.1}
  #allocation0 [shape = 'u32[]', space=smem, size = 0x4, offset = 0x4, fixed_abs, tag = 'smem constant byte address 0x4 - core index']
  #allocation1 [shape = 'u32[144,128]{1,0:T(1,128)}', space=vmem, size = 0x12000, scoped, tag = 'internal scratch']
  %s0 = inlined_call_operand.vmem [shape: f32[2,128,32], index: 0, kind: input, shape index: {}]
  %s1 = inlined_call_operand.vmem [shape: f32[1,32], index: 1, kind: input, shape index: {}]
  %s2 = inlined_call_operand.vmem [shape: f32[1,32], index: 2, kind: input, shape index: {}]
  %s3 = inlined_call_operand.vmem [shape: f32[2,32,128], index: 3, kind: input, shape index: {}]
  %s4 = inlined_call_operand.vmem [shape: f32[8,128], index: 4, kind: input, shape index: {}]
  %s5 = inlined_call_operand.vmem [shape: f32[1,8], index: 5, kind: input, shape index: {}]
  %s6 = inlined_call_operand.vmem [shape: bf16[128,128], index: 6, kind: input, shape index: {}]
  %s7 = inlined_call_operand.vmem [shape: bf16[128,128], index: 7, kind: input, shape index: {}]
  %s8 = inlined_call_operand.vmem [shape: f32[1,128], index: 8, kind: input, shape index: {}]
  %s9 = inlined_call_operand.vmem [shape: bf16[128,128], index: 9, kind: input, shape index: {}]
  %s10 = inlined_call_operand.vmem [shape: f32[1,128], index: 10, kind: input, shape index: {}]
  %s11 = inlined_call_operand.vmem [shape: s32[128,1], index: 11, kind: output, shape index: {0}]
  %s12 = inlined_call_operand.hbm [shape: f32[128,128], index: 12, kind: output, shape index: {1}]
  %13 = xla_tuple %s11, %s12
  %s14 = sld [smem:[#allocation0]]
  $region62: #{tpu_custom_call.1} parent=0
    _
  %s16 = ssub.s32 1, %s14
  %s17 = scalar_select 0, %s16, %s14
  $region1: #{tpu_custom_call.1} parent=0
    #allocation2 [shape = 'u8[65536]{0}', space=vmem, size = 0x10000, scoped, tag = 'output window, operand 1, single buffered']
    #allocation3 [shape = 's32[1]{0}', space=sflag, size = 0x4, scoped, tag = 'scoped memory for tpu_custom_call.1']
    %18 = vsyncpa [#allocation3], 0
    // Predicated region
    $region2: #{tpu_custom_call.1} parent=1 // pred_check
      _
    $region3: #{tpu_custom_call.1} parent=1 // pred_check_branch
      %20 = sbr.rel (0) target = $region5
    $region4: #{tpu_custom_call.1} parent=1 // pred_region
      _
    $region5: #{tpu_custom_call.1} parent=1 // pred_fallthru
      _
    // Predicated region
    $region6: #{tpu_custom_call.1} parent=1 // pred_check
      _
    $region7: #{tpu_custom_call.1} parent=1 // pred_check_branch
      %22 = sbr.rel (0) target = $region9
    $region8: #{tpu_custom_call.1} parent=1 // pred_region
      _
    $region9: #{tpu_custom_call.1} parent=1 // pred_fallthru
      _
    // Predicated region
    $region10: #{tpu_custom_call.1} parent=1 // pred_check
      _
    $region11: #{tpu_custom_call.1} parent=1 // pred_check_branch
      %24 = sbr.rel (0) target = $region13
    $region12: #{tpu_custom_call.1} parent=1 // pred_region
      _
    $region13: #{tpu_custom_call.1} parent=1 // pred_fallthru
      _
    // Predicated region
    $region14: #{tpu_custom_call.1} parent=1 // pred_check
      _
    $region15: #{tpu_custom_call.1} parent=1 // pred_check_branch
      %26 = sbr.rel (0) target = $region17
    $region16: #{tpu_custom_call.1} parent=1 // pred_region
      _
    $region17: #{tpu_custom_call.1} parent=1 // pred_fallthru
      _
    // Predicated region
    $region18: #{tpu_custom_call.1} parent=1 // pred_check
      _
    $region19: #{tpu_custom_call.1} parent=1 // pred_check_branch
      %28 = sbr.rel (0) target = $region21
    $region20: #{tpu_custom_call.1} parent=1 // pred_region
      _
    $region21: #{tpu_custom_call.1} parent=1 // pred_fallthru
      _
    // Predicated region
    $region22: #{tpu_custom_call.1} parent=1 // pred_check
      _
    $region23: #{tpu_custom_call.1} parent=1 // pred_check_branch
      %30 = sbr.rel (0) target = $region25
    $region24: #{tpu_custom_call.1} parent=1 // pred_region
      _
    $region25: #{tpu_custom_call.1} parent=1 // pred_fallthru
      _
    // Predicated region
    $region26: #{tpu_custom_call.1} parent=1 // pred_check
      _
    $region27: #{tpu_custom_call.1} parent=1 // pred_check_branch
      %32 = sbr.rel (0) target = $region29
    $region28: #{tpu_custom_call.1} parent=1 // pred_region
      _
    $region29: #{tpu_custom_call.1} parent=1 // pred_fallthru
      _
    // Predicated region
    $region30: #{tpu_custom_call.1} parent=1 // pred_check
      _
    $region31: #{tpu_custom_call.1} parent=1 // pred_check_branch
      %34 = sbr.rel (0) target = $region33
    $region32: #{tpu_custom_call.1} parent=1 // pred_region
      _
    $region33: #{tpu_custom_call.1} parent=1 // pred_fallthru
      _
    // Predicated region
    $region34: #{tpu_custom_call.1} parent=1 // pred_check
      _
    $region35: #{tpu_custom_call.1} parent=1 // pred_check_branch
      %36 = sbr.rel (0) target = $region37
    $region36: #{tpu_custom_call.1} parent=1 // pred_region
      _
    $region37: #{tpu_custom_call.1} parent=1 // pred_fallthru
      _
    // Predicated region
    $region38: #{tpu_custom_call.1} parent=1 // pred_check
      _
    $region39: #{tpu_custom_call.1} parent=1 // pred_check_branch
      %38 = sbr.rel (0) target = $region41
    $region40: #{tpu_custom_call.1} parent=1 // pred_region
      _
    $region41: #{tpu_custom_call.1} parent=1 // pred_fallthru
      _
    // Predicated region
    $region42: #{tpu_custom_call.1} parent=1 // pred_check
      _
    $region43: #{tpu_custom_call.1} parent=1 // pred_check_branch
      %40 = sbr.rel (0) target = $region45
    $region44: #{tpu_custom_call.1} parent=1 // pred_region
      _
    $region45: #{tpu_custom_call.1} parent=1 // pred_fallthru
      _
    %v42 = vld [vmem:[%s1] sm:$0x1]
    %v43 = vld [vmem:[%s2] sm:$0x1]
    %v44 = vld [vmem:[%s0] sm:$0xff]
    %v45 = vld [vmem:[%s0 + $0x8] sm:$0xff]
    %v46 = vld [vmem:[%s0 + $0x10] sm:$0xff]
    %v47 = vld [vmem:[%s0 + $0x18] sm:$0xff]
    %v48 = vld [vmem:[%s0 + $0x20] sm:$0xff]
    %v49 = vld [vmem:[%s0 + $0x28] sm:$0xff]
    %v50 = vld [vmem:[%s0 + $0x30] sm:$0xff]
    %v51 = vld [vmem:[%s0 + $0x38] sm:$0xff]
    %v52 = vld [vmem:[%s0 + $0x40] sm:$0xff]
    %v53 = vld [vmem:[%s0 + $0x48] sm:$0xff]
    %v54 = vld [vmem:[%s0 + $0x50] sm:$0xff]
    %v55 = vld [vmem:[%s0 + $0x58] sm:$0xff]
    %v56 = vld [vmem:[%s0 + $0x60] sm:$0xff]
    %v57 = vld [vmem:[%s0 + $0x68] sm:$0xff]
    %v58 = vld [vmem:[%s0 + $0x70] sm:$0xff]
    %v59 = vld [vmem:[%s0 + $0x78] sm:$0xff]
    %vm60 = vcmask 261120
    %v61 = vsel %vm60, %v44, 0.0
    %62 = vadd.xlane.f32.xlu0 %v61
    %v63 = vpop.xlane.xlu0 %62
    %v64 = vsel %vm60, %v45, 0.0
    %65 = vadd.xlane.f32.xlu0 %v64
    %v66 = vpop.xlane.xlu0 %65
    %v67 = vsel %vm60, %v46, 0.0
    %68 = vadd.xlane.f32.xlu0 %v67
    %v69 = vpop.xlane.xlu0 %68
    %v70 = vsel %vm60, %v47, 0.0
    %71 = vadd.xlane.f32.xlu0 %v70
    %v72 = vpop.xlane.xlu0 %71
    %v73 = vsel %vm60, %v48, 0.0
    %74 = vadd.xlane.f32.xlu0 %v73
    %v75 = vpop.xlane.xlu0 %74
    %v76 = vsel %vm60, %v49, 0.0
    %77 = vadd.xlane.f32.xlu0 %v76
    %v78 = vpop.xlane.xlu0 %77
    %v79 = vsel %vm60, %v50, 0.0
    %80 = vadd.xlane.f32.xlu0 %v79
    %v81 = vpop.xlane.xlu0 %80
    %v82 = vsel %vm60, %v51, 0.0
    %83 = vadd.xlane.f32.xlu0 %v82
    %v84 = vpop.xlane.xlu0 %83
    %v85 = vsel %vm60, %v52, 0.0
    %86 = vadd.xlane.f32.xlu0 %v85
    %v87 = vpop.xlane.xlu0 %86
    %v88 = vsel %vm60, %v53, 0.0
    %89 = vadd.xlane.f32.xlu0 %v88
    %v90 = vpop.xlane.xlu0 %89
    %v91 = vsel %vm60, %v54, 0.0
    %92 = vadd.xlane.f32.xlu0 %v91
    %v93 = vpop.xlane.xlu0 %92
    %v94 = vsel %vm60, %v55, 0.0
    %95 = vadd.xlane.f32.xlu0 %v94
    %v96 = vpop.xlane.xlu0 %95
    %v97 = vsel %vm60, %v56, 0.0
    %98 = vadd.xlane.f32.xlu0 %v97
    %v99 = vpop.xlane.xlu0 %98
    %v100 = vsel %vm60, %v57, 0.0
    %101 = vadd.xlane.f32.xlu0 %v100
    %v102 = vpop.xlane.xlu0 %101
    %v103 = vsel %vm60, %v58, 0.0
    %104 = vadd.xlane.f32.xlu0 %v103
    %v105 = vpop.xlane.xlu0 %104
    %v106 = vsel %vm60, %v59, 0.0
    %107 = vadd.xlane.f32.xlu0 %v106
    %v108 = vpop.xlane.xlu0 %107
    %v109 = vrcp.pop 32.0
    %v110 = vmul.f32 %v63, %v109
    %v111 = vmul.f32 %v66, %v109
    %v112 = vmul.f32 %v69, %v109
    %v113 = vmul.f32 %v72, %v109
    %v114 = vmul.f32 %v75, %v109
    %v115 = vmul.f32 %v78, %v109
    %v116 = vmul.f32 %v81, %v109
    %v117 = vmul.f32 %v84, %v109
    %v118 = vmul.f32 %v87, %v109
    %v119 = vmul.f32 %v90, %v109
    %v120 = vmul.f32 %v93, %v109
    %v121 = vmul.f32 %v96, %v109
    %v122 = vmul.f32 %v99, %v109
    %v123 = vmul.f32 %v102, %v109
    %v124 = vmul.f32 %v105, %v109
    %v125 = vmul.f32 %v108, %v109
    %v126 = vsub.f32 %v44, %v110
    %v127 = vsub.f32 %v45, %v111
    %v128 = vsub.f32 %v46, %v112
    %v129 = vsub.f32 %v47, %v113
    %v130 = vsub.f32 %v48, %v114
    %v131 = vsub.f32 %v49, %v115
    %v132 = vsub.f32 %v50, %v116
    %v133 = vsub.f32 %v51, %v117
    %v134 = vsub.f32 %v52, %v118
    %v135 = vsub.f32 %v53, %v119
    %v136 = vsub.f32 %v54, %v120
    %v137 = vsub.f32 %v55, %v121
    %v138 = vsub.f32 %v56, %v122
    %v139 = vsub.f32 %v57, %v123
    %v140 = vsub.f32 %v58, %v124
    %v141 = vsub.f32 %v59, %v125
    %v142 = vmul.f32 %v126, %v126
    %v143 = vmul.f32 %v127, %v127
    %v144 = vmul.f32 %v128, %v128
    %v145 = vmul.f32 %v129, %v129
    %v146 = vmul.f32 %v130, %v130
    %v147 = vmul.f32 %v131, %v131
    %v148 = vmul.f32 %v132, %v132
    %v149 = vmul.f32 %v133, %v133
    %v150 = vmul.f32 %v134, %v134
    %v151 = vmul.f32 %v135, %v135
    %v152 = vmul.f32 %v136, %v136
    %v153 = vmul.f32 %v137, %v137
    %v154 = vmul.f32 %v138, %v138
    %v155 = vmul.f32 %v139, %v139
    %v156 = vmul.f32 %v140, %v140
    %v157 = vmul.f32 %v141, %v141
    %v158 = vsel %vm60, %v142, 0.0
    %159 = vadd.xlane.f32.xlu0 %v158
    %v160 = vpop.xlane.xlu0 %159
    %v161 = vsel %vm60, %v143, 0.0
    %162 = vadd.xlane.f32.xlu0 %v161
    %v163 = vpop.xlane.xlu0 %162
    %v164 = vsel %vm60, %v144, 0.0
    %165 = vadd.xlane.f32.xlu0 %v164
    %v166 = vpop.xlane.xlu0 %165
    %v167 = vsel %vm60, %v145, 0.0
    %168 = vadd.xlane.f32.xlu0 %v167
    %v169 = vpop.xlane.xlu0 %168
    %v170 = vsel %vm60, %v146, 0.0
    %171 = vadd.xlane.f32.xlu0 %v170
    %v172 = vpop.xlane.xlu0 %171
    %v173 = vsel %vm60, %v147, 0.0
    %174 = vadd.xlane.f32.xlu0 %v173
    %v175 = vpop.xlane.xlu0 %174
    %v176 = vsel %vm60, %v148, 0.0
    %177 = vadd.xlane.f32.xlu0 %v176
    %v178 = vpop.xlane.xlu0 %177
    %v179 = vsel %vm60, %v149, 0.0
    %180 = vadd.xlane.f32.xlu0 %v179
    %v181 = vpop.xlane.xlu0 %180
    %v182 = vsel %vm60, %v150, 0.0
    %183 = vadd.xlane.f32.xlu0 %v182
    %v184 = vpop.xlane.xlu0 %183
    %v185 = vsel %vm60, %v151, 0.0
    %186 = vadd.xlane.f32.xlu0 %v185
    %v187 = vpop.xlane.xlu0 %186
    %v188 = vsel %vm60, %v152, 0.0
    %189 = vadd.xlane.f32.xlu0 %v188
    %v190 = vpop.xlane.xlu0 %189
    %v191 = vsel %vm60, %v153, 0.0
    %192 = vadd.xlane.f32.xlu0 %v191
    %v193 = vpop.xlane.xlu0 %192
    %v194 = vsel %vm60, %v154, 0.0
    %195 = vadd.xlane.f32.xlu0 %v194
    %v196 = vpop.xlane.xlu0 %195
    %v197 = vsel %vm60, %v155, 0.0
    %198 = vadd.xlane.f32.xlu0 %v197
    %v199 = vpop.xlane.xlu0 %198
    %v200 = vsel %vm60, %v156, 0.0
    %201 = vadd.xlane.f32.xlu0 %v200
    %v202 = vpop.xlane.xlu0 %201
    %v203 = vsel %vm60, %v157, 0.0
    %204 = vadd.xlane.f32.xlu0 %v203
    %v205 = vpop.xlane.xlu0 %204
    %v206 = vmul.f32 %v160, %v109
    %v207 = vmul.f32 %v163, %v109
    %v208 = vmul.f32 %v166, %v109
    %v209 = vmul.f32 %v169, %v109
    %v210 = vmul.f32 %v172, %v109
    %v211 = vmul.f32 %v175, %v109
    %v212 = vmul.f32 %v178, %v109
    %v213 = vmul.f32 %v181, %v109
    %v214 = vmul.f32 %v184, %v109
    %v215 = vmul.f32 %v187, %v109
    %v216 = vmul.f32 %v190, %v109
    %v217 = vmul.f32 %v193, %v109
    %v218 = vmul.f32 %v196, %v109
    %v219 = vmul.f32 %v199, %v109
    %v220 = vmul.f32 %v202, %v109
    %v221 = vmul.f32 %v205, %v109
    %v222 = vadd.f32 %v206, 1e-05
    %v223 = vadd.f32 %v207, 1e-05
    %v224 = vadd.f32 %v208, 1e-05
    %v225 = vadd.f32 %v209, 1e-05
    %v226 = vadd.f32 %v210, 1e-05
    %v227 = vadd.f32 %v211, 1e-05
    %v228 = vadd.f32 %v212, 1e-05
    %v229 = vadd.f32 %v213, 1e-05
    %v230 = vadd.f32 %v214, 1e-05
    %v231 = vadd.f32 %v215, 1e-05
    %v232 = vadd.f32 %v216, 1e-05
    %v233 = vadd.f32 %v217, 1e-05
    %v234 = vadd.f32 %v218, 1e-05
    %v235 = vadd.f32 %v219, 1e-05
    %v236 = vadd.f32 %v220, 1e-05
    %v237 = vadd.f32 %v221, 1e-05
    %v238 = vrsqrt.pop %v222
    %v239 = vrsqrt.pop %v223
    %v240 = vrsqrt.pop %v224
    %v241 = vrsqrt.pop %v225
    %v242 = vrsqrt.pop %v226
    %v243 = vrsqrt.pop %v227
    %v244 = vrsqrt.pop %v228
    %v245 = vrsqrt.pop %v229
    %v246 = vrsqrt.pop %v230
    %v247 = vrsqrt.pop %v231
    %v248 = vrsqrt.pop %v232
    %v249 = vrsqrt.pop %v233
    %v250 = vrsqrt.pop %v234
    %v251 = vrsqrt.pop %v235
    %v252 = vrsqrt.pop %v236
    %v253 = vrsqrt.pop %v237
    %v254 = vmul.f32 %v126, %v238
    %v255 = vmul.f32 %v127, %v239
    %v256 = vmul.f32 %v128, %v240
    %v257 = vmul.f32 %v129, %v241
    %v258 = vmul.f32 %v130, %v242
    %v259 = vmul.f32 %v131, %v243
    %v260 = vmul.f32 %v132, %v244
    %v261 = vmul.f32 %v133, %v245
    %v262 = vmul.f32 %v134, %v246
    %v263 = vmul.f32 %v135, %v247
    %v264 = vmul.f32 %v136, %v248
    %v265 = vmul.f32 %v137, %v249
    %v266 = vmul.f32 %v138, %v250
    %v267 = vmul.f32 %v139, %v251
    %v268 = vmul.f32 %v140, %v252
    %v269 = vmul.f32 %v141, %v253
    %v271 = vlaneseq
    %v272 = vshrl.u32 %v271, 7
    %v273 = vsub.s32 0, %v272
    %v274 = vrot.slane %v42, %v273
    %v276 = vmul.f32 %v254, %v274
    %v277 = vmul.f32 %v255, %v274
    %v278 = vmul.f32 %v256, %v274
    %v279 = vmul.f32 %v257, %v274
    %v280 = vmul.f32 %v258, %v274
    %v281 = vmul.f32 %v259, %v274
    %v282 = vmul.f32 %v260, %v274
    %v283 = vmul.f32 %v261, %v274
    %v284 = vmul.f32 %v262, %v274
    %v285 = vmul.f32 %v263, %v274
    %v286 = vmul.f32 %v264, %v274
    %v287 = vmul.f32 %v265, %v274
    %v288 = vmul.f32 %v266, %v274
    %v289 = vmul.f32 %v267, %v274
    %v290 = vmul.f32 %v268, %v274
    %v291 = vmul.f32 %v269, %v274
    %v293 = vlaneseq
    %v294 = vshrl.u32 %v293, 7
    %v295 = vsub.s32 0, %v294
    %v296 = vrot.slane %v43, %v295
    %v298 = vadd.f32 %v276, %v296
    %v299 = vadd.f32 %v277, %v296
    %v300 = vadd.f32 %v278, %v296
    %v301 = vadd.f32 %v279, %v296
    %v302 = vadd.f32 %v280, %v296
    %v303 = vadd.f32 %v281, %v296
    %v304 = vadd.f32 %v282, %v296
    %v305 = vadd.f32 %v283, %v296
    %v306 = vadd.f32 %v284, %v296
    %v307 = vadd.f32 %v285, %v296
    %v308 = vadd.f32 %v286, %v296
    %v309 = vadd.f32 %v287, %v296
    %v310 = vadd.f32 %v288, %v296
    %v311 = vadd.f32 %v289, %v296
    %v312 = vadd.f32 %v290, %v296
    %v313 = vadd.f32 %v291, %v296
    %v314 = vld [vmem:[%s3] sm:$0xff]
    %v315 = vld [vmem:[%s3 + $0x8] sm:$0xff]
    %v316 = vld [vmem:[%s3 + $0x10] sm:$0xff]
    %v317 = vld [vmem:[%s3 + $0x18] sm:$0xff]
    %s318 = scalar_lea.vmem %s0, 128
    %v319 = vld [vmem:[%s318] sm:$0xff]
    %v320 = vld [vmem:[%s318 + $0x8] sm:$0xff]
    %v321 = vld [vmem:[%s318 + $0x10] sm:$0xff]
    %v322 = vld [vmem:[%s318 + $0x18] sm:$0xff]
    %v323 = vld [vmem:[%s318 + $0x20] sm:$0xff]
    %v324 = vld [vmem:[%s318 + $0x28] sm:$0xff]
    %v325 = vld [vmem:[%s318 + $0x30] sm:$0xff]
    %v326 = vld [vmem:[%s318 + $0x38] sm:$0xff]
    %v327 = vld [vmem:[%s318 + $0x40] sm:$0xff]
    %v328 = vld [vmem:[%s318 + $0x48] sm:$0xff]
    %v329 = vld [vmem:[%s318 + $0x50] sm:$0xff]
    %v330 = vld [vmem:[%s318 + $0x58] sm:$0xff]
    %v331 = vld [vmem:[%s318 + $0x60] sm:$0xff]
    %v332 = vld [vmem:[%s318 + $0x68] sm:$0xff]
    %v333 = vld [vmem:[%s318 + $0x70] sm:$0xff]
    %v334 = vld [vmem:[%s318 + $0x78] sm:$0xff]
    %v335 = vsel %vm60, %v319, 0.0
    %336 = vadd.xlane.f32.xlu0 %v335
    %v337 = vpop.xlane.xlu0 %336
    %v338 = vsel %vm60, %v320, 0.0
    %339 = vadd.xlane.f32.xlu0 %v338
    %v340 = vpop.xlane.xlu0 %339
    %v341 = vsel %vm60, %v321, 0.0
    %342 = vadd.xlane.f32.xlu0 %v341
    %v343 = vpop.xlane.xlu0 %342
    %v344 = vsel %vm60, %v322, 0.0
    %345 = vadd.xlane.f32.xlu0 %v344
    %v346 = vpop.xlane.xlu0 %345
    %v347 = vsel %vm60, %v323, 0.0
    %348 = vadd.xlane.f32.xlu0 %v347
    %v349 = vpop.xlane.xlu0 %348
    %v350 = vsel %vm60, %v324, 0.0
    %351 = vadd.xlane.f32.xlu0 %v350
    %v352 = vpop.xlane.xlu0 %351
    %v353 = vsel %vm60, %v325, 0.0
    %354 = vadd.xlane.f32.xlu0 %v353
    %v355 = vpop.xlane.xlu0 %354
    %v356 = vsel %vm60, %v326, 0.0
    %357 = vadd.xlane.f32.xlu0 %v356
    %v358 = vpop.xlane.xlu0 %357
    %v359 = vsel %vm60, %v327, 0.0
    %360 = vadd.xlane.f32.xlu0 %v359
    %v361 = vpop.xlane.xlu0 %360
    %v362 = vsel %vm60, %v328, 0.0
    %363 = vadd.xlane.f32.xlu0 %v362
    %v364 = vpop.xlane.xlu0 %363
    %v365 = vsel %vm60, %v329, 0.0
    %366 = vadd.xlane.f32.xlu0 %v365
    %v367 = vpop.xlane.xlu0 %366
    %v368 = vsel %vm60, %v330, 0.0
    %369 = vadd.xlane.f32.xlu0 %v368
    %v370 = vpop.xlane.xlu0 %369
    %v371 = vsel %vm60, %v331, 0.0
    %372 = vadd.xlane.f32.xlu0 %v371
    %v373 = vpop.xlane.xlu0 %372
    %v374 = vsel %vm60, %v332, 0.0
    %375 = vadd.xlane.f32.xlu0 %v374
    %v376 = vpop.xlane.xlu0 %375
    %v377 = vsel %vm60, %v333, 0.0
    %378 = vadd.xlane.f32.xlu0 %v377
    %v379 = vpop.xlane.xlu0 %378
    %v380 = vsel %vm60, %v334, 0.0
    %381 = vadd.xlane.f32.xlu0 %v380
    %v382 = vpop.xlane.xlu0 %381
    %v383 = vmul.f32 %v337, %v109
    %v384 = vmul.f32 %v340, %v109
    %v385 = vmul.f32 %v343, %v109
    %v386 = vmul.f32 %v346, %v109
    %v387 = vmul.f32 %v349, %v109
    %v388 = vmul.f32 %v352, %v109
    %v389 = vmul.f32 %v355, %v109
    %v390 = vmul.f32 %v358, %v109
    %v391 = vmul.f32 %v361, %v109
    %v392 = vmul.f32 %v364, %v109
    %v393 = vmul.f32 %v367, %v109
    %v394 = vmul.f32 %v370, %v109
    %v395 = vmul.f32 %v373, %v109
    %v396 = vmul.f32 %v376, %v109
    %v397 = vmul.f32 %v379, %v109
    %v398 = vmul.f32 %v382, %v109
    %v399 = vsub.f32 %v319, %v383
    %v400 = vsub.f32 %v320, %v384
    %v401 = vsub.f32 %v321, %v385
    %v402 = vsub.f32 %v322, %v386
    %v403 = vsub.f32 %v323, %v387
    %v404 = vsub.f32 %v324, %v388
    %v405 = vsub.f32 %v325, %v389
    %v406 = vsub.f32 %v326, %v390
    %v407 = vsub.f32 %v327, %v391
    %v408 = vsub.f32 %v328, %v392
    %v409 = vsub.f32 %v329, %v393
    %v410 = vsub.f32 %v330, %v394
    %v411 = vsub.f32 %v331, %v395
    %v412 = vsub.f32 %v332, %v396
    %v413 = vsub.f32 %v333, %v397
    %v414 = vsub.f32 %v334, %v398
    %v415 = vmul.f32 %v399, %v399
    %v416 = vmul.f32 %v400, %v400
    %v417 = vmul.f32 %v401, %v401
    %v418 = vmul.f32 %v402, %v402
    %v419 = vmul.f32 %v403, %v403
    %v420 = vmul.f32 %v404, %v404
    %v421 = vmul.f32 %v405, %v405
    %v422 = vmul.f32 %v406, %v406
    %v423 = vmul.f32 %v407, %v407
    %v424 = vmul.f32 %v408, %v408
    %v425 = vmul.f32 %v409, %v409
    %v426 = vmul.f32 %v410, %v410
    %v427 = vmul.f32 %v411, %v411
    %v428 = vmul.f32 %v412, %v412
    %v429 = vmul.f32 %v413, %v413
    %v430 = vmul.f32 %v414, %v414
    %v431 = vsel %vm60, %v415, 0.0
    %432 = vadd.xlane.f32.xlu0 %v431
    %v433 = vpop.xlane.xlu0 %432
    %v434 = vsel %vm60, %v416, 0.0
    %435 = vadd.xlane.f32.xlu0 %v434
    %v436 = vpop.xlane.xlu0 %435
    %v437 = vsel %vm60, %v417, 0.0
    %438 = vadd.xlane.f32.xlu0 %v437
    %v439 = vpop.xlane.xlu0 %438
    %v440 = vsel %vm60, %v418, 0.0
    %441 = vadd.xlane.f32.xlu0 %v440
    %v442 = vpop.xlane.xlu0 %441
    %v443 = vsel %vm60, %v419, 0.0
    %444 = vadd.xlane.f32.xlu0 %v443
    %v445 = vpop.xlane.xlu0 %444
    %v446 = vsel %vm60, %v420, 0.0
    %447 = vadd.xlane.f32.xlu0 %v446
    %v448 = vpop.xlane.xlu0 %447
    %v449 = vsel %vm60, %v421, 0.0
    %450 = vadd.xlane.f32.xlu0 %v449
    %v451 = vpop.xlane.xlu0 %450
    %v452 = vsel %vm60, %v422, 0.0
    %453 = vadd.xlane.f32.xlu0 %v452
    %v454 = vpop.xlane.xlu0 %453
    %v455 = vsel %vm60, %v423, 0.0
    %456 = vadd.xlane.f32.xlu0 %v455
    %v457 = vpop.xlane.xlu0 %456
    %v458 = vsel %vm60, %v424, 0.0
    %459 = vadd.xlane.f32.xlu0 %v458
    %v460 = vpop.xlane.xlu0 %459
    %v461 = vsel %vm60, %v425, 0.0
    %462 = vadd.xlane.f32.xlu0 %v461
    %v463 = vpop.xlane.xlu0 %462
    %v464 = vsel %vm60, %v426, 0.0
    %465 = vadd.xlane.f32.xlu0 %v464
    %v466 = vpop.xlane.xlu0 %465
    %v467 = vsel %vm60, %v427, 0.0
    %468 = vadd.xlane.f32.xlu0 %v467
    %v469 = vpop.xlane.xlu0 %468
    %v470 = vsel %vm60, %v428, 0.0
    %471 = vadd.xlane.f32.xlu0 %v470
    %v472 = vpop.xlane.xlu0 %471
    %v473 = vsel %vm60, %v429, 0.0
    %474 = vadd.xlane.f32.xlu0 %v473
    %v475 = vpop.xlane.xlu0 %474
    %v476 = vsel %vm60, %v430, 0.0
    %477 = vadd.xlane.f32.xlu0 %v476
    %v478 = vpop.xlane.xlu0 %477
    %v479 = vmul.f32 %v433, %v109
    %v480 = vmul.f32 %v436, %v109
    %v481 = vmul.f32 %v439, %v109
    %v482 = vmul.f32 %v442, %v109
    %v483 = vmul.f32 %v445, %v109
    %v484 = vmul.f32 %v448, %v109
    %v485 = vmul.f32 %v451, %v109
    %v486 = vmul.f32 %v454, %v109
    %v487 = vmul.f32 %v457, %v109
    %v488 = vmul.f32 %v460, %v109
    %v489 = vmul.f32 %v463, %v109
    %v490 = vmul.f32 %v466, %v109
    %v491 = vmul.f32 %v469, %v109
    %v492 = vmul.f32 %v472, %v109
    %v493 = vmul.f32 %v475, %v109
    %v494 = vmul.f32 %v478, %v109
    %v495 = vadd.f32 %v479, 1e-05
    %v496 = vadd.f32 %v480, 1e-05
    %v497 = vadd.f32 %v481, 1e-05
    %v498 = vadd.f32 %v482, 1e-05
    %v499 = vadd.f32 %v483, 1e-05
    %v500 = vadd.f32 %v484, 1e-05
    %v501 = vadd.f32 %v485, 1e-05
    %v502 = vadd.f32 %v486, 1e-05
    %v503 = vadd.f32 %v487, 1e-05
    %v504 = vadd.f32 %v488, 1e-05
    %v505 = vadd.f32 %v489, 1e-05
    %v506 = vadd.f32 %v490, 1e-05
    %v507 = vadd.f32 %v491, 1e-05
    %v508 = vadd.f32 %v492, 1e-05
    %v509 = vadd.f32 %v493, 1e-05
    %v510 = vadd.f32 %v494, 1e-05
    %v511 = vrsqrt.pop %v495
    %v512 = vrsqrt.pop %v496
    %v513 = vrsqrt.pop %v497
    %v514 = vrsqrt.pop %v498
    %v515 = vrsqrt.pop %v499
    %v516 = vrsqrt.pop %v500
    %v517 = vrsqrt.pop %v501
    %v518 = vrsqrt.pop %v502
    %v519 = vrsqrt.pop %v503
    %v520 = vrsqrt.pop %v504
    %v521 = vrsqrt.pop %v505
    %v522 = vrsqrt.pop %v506
    %v523 = vrsqrt.pop %v507
    %v524 = vrsqrt.pop %v508
    %v525 = vrsqrt.pop %v509
    %v526 = vrsqrt.pop %v510
    %v527 = vmul.f32 %v399, %v511
    %v528 = vmul.f32 %v400, %v512
    %v529 = vmul.f32 %v401, %v513
    %v530 = vmul.f32 %v402, %v514
    %v531 = vmul.f32 %v403, %v515
    %v532 = vmul.f32 %v404, %v516
    %v533 = vmul.f32 %v405, %v517
    %v534 = vmul.f32 %v406, %v518
    %v535 = vmul.f32 %v407, %v519
    %v536 = vmul.f32 %v408, %v520
    %v537 = vmul.f32 %v409, %v521
    %v538 = vmul.f32 %v410, %v522
    %v539 = vmul.f32 %v411, %v523
    %v540 = vmul.f32 %v412, %v524
    %v541 = vmul.f32 %v413, %v525
    %v542 = vmul.f32 %v414, %v526
    %v543 = vmul.f32 %v527, %v274
    %v544 = vmul.f32 %v528, %v274
    %v545 = vmul.f32 %v529, %v274
    %v546 = vmul.f32 %v530, %v274
    %v547 = vmul.f32 %v531, %v274
    %v548 = vmul.f32 %v532, %v274
    %v549 = vmul.f32 %v533, %v274
    %v550 = vmul.f32 %v534, %v274
    %v551 = vmul.f32 %v535, %v274
    %v552 = vmul.f32 %v536, %v274
    %v553 = vmul.f32 %v537, %v274
    %v554 = vmul.f32 %v538, %v274
    %v555 = vmul.f32 %v539, %v274
    %v556 = vmul.f32 %v540, %v274
    %v557 = vmul.f32 %v541, %v274
    %v558 = vmul.f32 %v542, %v274
    %v559 = vadd.f32 %v543, %v296
    %v560 = vadd.f32 %v544, %v296
    %v561 = vadd.f32 %v545, %v296
    %v562 = vadd.f32 %v546, %v296
    %v563 = vadd.f32 %v547, %v296
    %v564 = vadd.f32 %v548, %v296
    %v565 = vadd.f32 %v549, %v296
    %v566 = vadd.f32 %v550, %v296
    %v567 = vadd.f32 %v551, %v296
    %v568 = vadd.f32 %v552, %v296
    %v569 = vadd.f32 %v553, %v296
    %v570 = vadd.f32 %v554, %v296
    %v571 = vadd.f32 %v555, %v296
    %v572 = vadd.f32 %v556, %v296
    %v573 = vadd.f32 %v557, %v296
    %v574 = vadd.f32 %v558, %v296
    %s575 = scalar_lea.vmem %s3, 32
    %v576 = vld [vmem:[%s575] sm:$0xff]
    %v577 = vld [vmem:[%s575 + $0x8] sm:$0xff]
    %v578 = vld [vmem:[%s575 + $0x10] sm:$0xff]
    %v579 = vld [vmem:[%s575 + $0x18] sm:$0xff]
    %v581 = vsel %vm60, %v559, 0
    %v584 = vsel %vm60, %v560, 0
    %v587 = vsel %vm60, %v561, 0
    %v590 = vsel %vm60, %v562, 0
    %v593 = vsel %vm60, %v563, 0
    %v596 = vsel %vm60, %v564, 0
    %v599 = vsel %vm60, %v565, 0
    %v602 = vsel %vm60, %v566, 0
    %v605 = vsel %vm60, %v567, 0
    %v608 = vsel %vm60, %v568, 0
    %v611 = vsel %vm60, %v569, 0
    %v614 = vsel %vm60, %v570, 0
    %v617 = vsel %vm60, %v571, 0
    %v620 = vsel %vm60, %v572, 0
    %v623 = vsel %vm60, %v573, 0
    %v626 = vsel %vm60, %v574, 0
    %628 = vmatprep.subr.mxu0 0.0
    %629 = vmatpush1.msra.mxu0 %v576
    %630 = vmatprep.subr.mxu0 0.0
    %631 = vmatpush1.msra.mxu0 %v577
    %632 = vmatprep.subr.mxu0 0.0
    %633 = vmatpush1.msra.mxu0 %v578
    %634 = vmatprep.subr.mxu0 0.0
    %635 = vmatpush1.msra.mxu0 %v579
    %636 = vmatprep.subr.mxu0 0.0
    %637 = vmatpush1.msra.mxu0 0.0
    %638 = vmatprep.subr.mxu0 0.0
    %639 = vmatpush1.msra.mxu0 0.0
    %640 = vmatprep.subr.mxu0 0.0
    %641 = vmatpush1.msra.mxu0 0.0
    %642 = vmatprep.subr.mxu0 0.0
    %643 = vmatpush1.msra.mxu0 0.0
    %644 = vmatprep.subr.mxu0 0.0
    %645 = vmatpush1.msra.mxu0 0.0
    %646 = vmatprep.subr.mxu0 0.0
    %647 = vmatpush1.msra.mxu0 0.0
    %648 = vmatprep.subr.mxu0 0.0
    %649 = vmatpush1.msra.mxu0 0.0
    %650 = vmatprep.subr.mxu0 0.0
    %651 = vmatpush1.msra.mxu0 0.0
    %652 = vmatprep.subr.mxu0 0.0
    %653 = vmatpush1.msra.mxu0 0.0
    %654 = vmatprep.subr.mxu0 0.0
    %655 = vmatpush1.msra.mxu0 0.0
    %656 = vmatprep.subr.mxu0 0.0
    %657 = vmatpush1.msra.mxu0 0.0
    %658 = vmatprep.subr.mxu0 0.0
    %659 = vmatpush1.msra.mxu0 0.0
    %660 = vmatprep.subr.mxu0 0.0
    %661 = vmatpush1.msra.mxu0 0.0
    %662 = vmatprep.subr.mxu0 0.0
    %663 = vmatpush1.msra.mxu0 0.0
    %664 = vmatprep.subr.mxu0 0.0
    %665 = vmatpush1.msra.mxu0 0.0
    %666 = vmatprep.subr.mxu0 0.0
    %667 = vmatpush1.msra.mxu0 0.0
    %668 = vmatprep.subr.mxu0 0.0
    %669 = vmatpush1.msra.mxu0 0.0
    %670 = vmatprep.subr.mxu0 0.0
    %671 = vmatpush1.msra.mxu0 0.0
    %672 = vmatprep.subr.mxu0 0.0
    %673 = vmatpush1.msra.mxu0 0.0
    %674 = vmatprep.subr.mxu0 0.0
    %675 = vmatpush1.msra.mxu0 0.0
    %676 = vmatprep.subr.mxu0 0.0
    %677 = vmatpush1.msra.mxu0 0.0
    %678 = vmatprep.subr.mxu0 0.0
    %679 = vmatpush1.msra.mxu0 0.0
    %680 = vmatprep.subr.mxu0 0.0
    %681 = vmatpush1.msra.mxu0 0.0
    %682 = vmatprep.subr.mxu0 0.0
    %683 = vmatpush1.msra.mxu0 0.0
    %684 = vmatprep.subr.mxu0 0.0
    %685 = vmatpush1.msra.mxu0 0.0
    %686 = vmatprep.subr.mxu0 0.0
    %687 = vmatpush1.msra.mxu0 0.0
    %688 = vmatprep.subr.mxu0 0.0
    %689 = vmatpush1.msra.mxu0 0.0
    %690 = vmatprep.subr.mxu0 0.0
    %691 = vmatpush1.msra.mxu0 0.0
    %692 = vmatprep.mubr.f32.mxu0 0.0
    %693 = vmatmul.mubr.f32.gmra.mrb[0].mxu0 %v581
    %v694 = vpop.f32.mrb[0].mxu0
    %v695 = vadd.f32 0.0, %v694
    %v696 = vpop.f32.mrb[0].mxu0
    %697 = vmatprep.mubr.f32.mxu0 0.0
    %698 = vmatmul.mubr.f32.gmra.mrb[0].mxu0 %v584
    %v699 = vpop.f32.mrb[0].mxu0
    %v700 = vadd.f32 0.0, %v699
    %v701 = vpop.f32.mrb[0].mxu0
    %702 = vmatprep.mubr.f32.mxu0 0.0
    %703 = vmatmul.mubr.f32.gmra.mrb[0].mxu0 %v587
    %v704 = vpop.f32.mrb[0].mxu0
    %v705 = vadd.f32 0.0, %v704
    %v706 = vpop.f32.mrb[0].mxu0
    %707 = vmatprep.mubr.f32.mxu0 0.0
    %708 = vmatmul.mubr.f32.gmra.mrb[0].mxu0 %v590
    %v709 = vpop.f32.mrb[0].mxu0
    %v710 = vadd.f32 0.0, %v709
    %v711 = vpop.f32.mrb[0].mxu0
    %712 = vmatprep.mubr.f32.mxu0 0.0
    %713 = vmatmul.mubr.f32.gmra.mrb[0].mxu0 %v593
    %v714 = vpop.f32.mrb[0].mxu0
    %v715 = vadd.f32 0.0, %v714
    %v716 = vpop.f32.mrb[0].mxu0
    %717 = vmatprep.mubr.f32.mxu0 0.0
    %718 = vmatmul.mubr.f32.gmra.mrb[0].mxu0 %v596
    %v719 = vpop.f32.mrb[0].mxu0
    %v720 = vadd.f32 0.0, %v719
    %v721 = vpop.f32.mrb[0].mxu0
    %722 = vmatprep.mubr.f32.mxu0 0.0
    %723 = vmatmul.mubr.f32.gmra.mrb[0].mxu0 %v599
    %v724 = vpop.f32.mrb[0].mxu0
    %v725 = vadd.f32 0.0, %v724
    %v726 = vpop.f32.mrb[0].mxu0
    %727 = vmatprep.mubr.f32.mxu0 0.0
    %728 = vmatmul.mubr.f32.gmra.mrb[0].mxu0 %v602
    %v729 = vpop.f32.mrb[0].mxu0
    %v730 = vadd.f32 0.0, %v729
    %v731 = vpop.f32.mrb[0].mxu0
    %732 = vmatprep.mubr.f32.mxu0 0.0
    %733 = vmatmul.mubr.f32.gmra.mrb[0].mxu0 %v605
    %v734 = vpop.f32.mrb[0].mxu0
    %v735 = vadd.f32 0.0, %v734
    %v736 = vpop.f32.mrb[0].mxu0
    %737 = vmatprep.mubr.f32.mxu0 0.0
    %738 = vmatmul.mubr.f32.gmra.mrb[0].mxu0 %v608
    %v739 = vpop.f32.mrb[0].mxu0
    %v740 = vadd.f32 0.0, %v739
    %v741 = vpop.f32.mrb[0].mxu0
    %742 = vmatprep.mubr.f32.mxu0 0.0
    %743 = vmatmul.mubr.f32.gmra.mrb[0].mxu0 %v611
    %v744 = vpop.f32.mrb[0].mxu0
    %v745 = vadd.f32 0.0, %v744
    %v746 = vpop.f32.mrb[0].mxu0
    %747 = vmatprep.mubr.f32.mxu0 0.0
    %748 = vmatmul.mubr.f32.gmra.mrb[0].mxu0 %v614
    %v749 = vpop.f32.mrb[0].mxu0
    %v750 = vadd.f32 0.0, %v749
    %v751 = vpop.f32.mrb[0].mxu0
    %752 = vmatprep.mubr.f32.mxu0 0.0
    %753 = vmatmul.mubr.f32.gmra.mrb[0].mxu0 %v617
    %v754 = vpop.f32.mrb[0].mxu0
    %v755 = vadd.f32 0.0, %v754
    %v756 = vpop.f32.mrb[0].mxu0
    %757 = vmatprep.mubr.f32.mxu0 0.0
    %758 = vmatmul.mubr.f32.gmra.mrb[0].mxu0 %v620
    %v759 = vpop.f32.mrb[0].mxu0
    %v760 = vadd.f32 0.0, %v759
    %v761 = vpop.f32.mrb[0].mxu0
    %762 = vmatprep.mubr.f32.mxu0 0.0
    %763 = vmatmul.mubr.f32.gmra.mrb[0].mxu0 %v623
    %v764 = vpop.f32.mrb[0].mxu0
    %v765 = vadd.f32 0.0, %v764
    %v766 = vpop.f32.mrb[0].mxu0
    %767 = vmatprep.mubr.f32.mxu0 0.0
    %768 = vmatmul.mubr.f32.gmra.mrb[0].mxu0 %v626
    %v769 = vpop.f32.mrb[0].mxu0
    %v770 = vadd.f32 0.0, %v769
    %v771 = vpop.f32.mrb[0].mxu0
    %772 = vdwg.mxu0
    %v774 = vsel %vm60, %v298, 0
    %v777 = vsel %vm60, %v299, 0
    %v780 = vsel %vm60, %v300, 0
    %v783 = vsel %vm60, %v301, 0
    %v786 = vsel %vm60, %v302, 0
    %v789 = vsel %vm60, %v303, 0
    %v792 = vsel %vm60, %v304, 0
    %v795 = vsel %vm60, %v305, 0
    %v798 = vsel %vm60, %v306, 0
    %v801 = vsel %vm60, %v307, 0
    %v804 = vsel %vm60, %v308, 0
    %v807 = vsel %vm60, %v309, 0
    %v810 = vsel %vm60, %v310, 0
    %v813 = vsel %vm60, %v311, 0
    %v816 = vsel %vm60, %v312, 0
    %v819 = vsel %vm60, %v313, 0
    %821 = vmatprep.subr.mxu0 0.0
    %822 = vmatpush1.msra.mxu0 %v314
    %823 = vmatprep.subr.mxu0 0.0
    %824 = vmatpush1.msra.mxu0 %v315
    %825 = vmatprep.subr.mxu0 0.0
    %826 = vmatpush1.msra.mxu0 %v316
    %827 = vmatprep.subr.mxu0 0.0
    %828 = vmatpush1.msra.mxu0 %v317
    %829 = vmatprep.subr.mxu0 0.0
    %830 = vmatpush1.msra.mxu0 0.0
    %831 = vmatprep.subr.mxu0 0.0
    %832 = vmatpush1.msra.mxu0 0.0
    %833 = vmatprep.subr.mxu0 0.0
    %834 = vmatpush1.msra.mxu0 0.0
    %835 = vmatprep.subr.mxu0 0.0
    %836 = vmatpush1.msra.mxu0 0.0
    %837 = vmatprep.subr.mxu0 0.0
    %838 = vmatpush1.msra.mxu0 0.0
    %839 = vmatprep.subr.mxu0 0.0
    %840 = vmatpush1.msra.mxu0 0.0
    %841 = vmatprep.subr.mxu0 0.0
    %842 = vmatpush1.msra.mxu0 0.0
    %843 = vmatprep.subr.mxu0 0.0
    %844 = vmatpush1.msra.mxu0 0.0
    %845 = vmatprep.subr.mxu0 0.0
    %846 = vmatpush1.msra.mxu0 0.0
    %847 = vmatprep.subr.mxu0 0.0
    %848 = vmatpush1.msra.mxu0 0.0
    %849 = vmatprep.subr.mxu0 0.0
    %850 = vmatpush1.msra.mxu0 0.0
    %851 = vmatprep.subr.mxu0 0.0
    %852 = vmatpush1.msra.mxu0 0.0
    %853 = vmatprep.subr.mxu0 0.0
    %854 = vmatpush1.msra.mxu0 0.0
    %855 = vmatprep.subr.mxu0 0.0
    %856 = vmatpush1.msra.mxu0 0.0
    %857 = vmatprep.subr.mxu0 0.0
    %858 = vmatpush1.msra.mxu0 0.0
    %859 = vmatprep.subr.mxu0 0.0
    %860 = vmatpush1.msra.mxu0 0.0
    %861 = vmatprep.subr.mxu0 0.0
    %862 = vmatpush1.msra.mxu0 0.0
    %863 = vmatprep.subr.mxu0 0.0
    %864 = vmatpush1.msra.mxu0 0.0
    %865 = vmatprep.subr.mxu0 0.0
    %866 = vmatpush1.msra.mxu0 0.0
    %867 = vmatprep.subr.mxu0 0.0
    %868 = vmatpush1.msra.mxu0 0.0
    %869 = vmatprep.subr.mxu0 0.0
    %870 = vmatpush1.msra.mxu0 0.0
    %871 = vmatprep.subr.mxu0 0.0
    %872 = vmatpush1.msra.mxu0 0.0
    %873 = vmatprep.subr.mxu0 0.0
    %874 = vmatpush1.msra.mxu0 0.0
    %875 = vmatprep.subr.mxu0 0.0
    %876 = vmatpush1.msra.mxu0 0.0
    %877 = vmatprep.subr.mxu0 0.0
    %878 = vmatpush1.msra.mxu0 0.0
    %879 = vmatprep.subr.mxu0 0.0
    %880 = vmatpush1.msra.mxu0 0.0
    %881 = vmatprep.subr.mxu0 0.0
    %882 = vmatpush1.msra.mxu0 0.0
    %883 = vmatprep.subr.mxu0 0.0
    %884 = vmatpush1.msra.mxu0 0.0
    %885 = vmatprep.mubr.f32.mxu0 0.0
    %886 = vmatmul.mubr.f32.gmra.mrb[0].mxu0 %v774
    %v887 = vpop.f32.mrb[0].mxu0
    %v888 = vadd.f32 %v695, %v887
    %v889 = vpop.f32.mrb[0].mxu0
    %890 = vmatprep.mubr.f32.mxu0 0.0
    %891 = vmatmul.mubr.f32.gmra.mrb[0].mxu0 %v777
    %v892 = vpop.f32.mrb[0].mxu0
    %v893 = vadd.f32 %v700, %v892
    %v894 = vpop.f32.mrb[0].mxu0
    %895 = vmatprep.mubr.f32.mxu0 0.0
    %896 = vmatmul.mubr.f32.gmra.mrb[0].mxu0 %v780
    %v897 = vpop.f32.mrb[0].mxu0
    %v898 = vadd.f32 %v705, %v897
    %v899 = vpop.f32.mrb[0].mxu0
    %900 = vmatprep.mubr.f32.mxu0 0.0
    %901 = vmatmul.mubr.f32.gmra.mrb[0].mxu0 %v783
    %v902 = vpop.f32.mrb[0].mxu0
    %v903 = vadd.f32 %v710, %v902
    %v904 = vpop.f32.mrb[0].mxu0
    %905 = vmatprep.mubr.f32.mxu0 0.0
    %906 = vmatmul.mubr.f32.gmra.mrb[0].mxu0 %v786
    %v907 = vpop.f32.mrb[0].mxu0
    %v908 = vadd.f32 %v715, %v907
    %v909 = vpop.f32.mrb[0].mxu0
    %910 = vmatprep.mubr.f32.mxu0 0.0
    %911 = vmatmul.mubr.f32.gmra.mrb[0].mxu0 %v789
    %v912 = vpop.f32.mrb[0].mxu0
    %v913 = vadd.f32 %v720, %v912
    %v914 = vpop.f32.mrb[0].mxu0
    %915 = vmatprep.mubr.f32.mxu0 0.0
    %916 = vmatmul.mubr.f32.gmra.mrb[0].mxu0 %v792
    %v917 = vpop.f32.mrb[0].mxu0
    %v918 = vadd.f32 %v725, %v917
    %v919 = vpop.f32.mrb[0].mxu0
    %920 = vmatprep.mubr.f32.mxu0 0.0
    %921 = vmatmul.mubr.f32.gmra.mrb[0].mxu0 %v795
    %v922 = vpop.f32.mrb[0].mxu0
    %v923 = vadd.f32 %v730, %v922
    %v924 = vpop.f32.mrb[0].mxu0
    %925 = vmatprep.mubr.f32.mxu0 0.0
    %926 = vmatmul.mubr.f32.gmra.mrb[0].mxu0 %v798
    %v927 = vpop.f32.mrb[0].mxu0
    %v928 = vadd.f32 %v735, %v927
    %v929 = vpop.f32.mrb[0].mxu0
    %930 = vmatprep.mubr.f32.mxu0 0.0
    %931 = vmatmul.mubr.f32.gmra.mrb[0].mxu0 %v801
    %v932 = vpop.f32.mrb[0].mxu0
    %v933 = vadd.f32 %v740, %v932
    %v934 = vpop.f32.mrb[0].mxu0
    %935 = vmatprep.mubr.f32.mxu0 0.0
    %936 = vmatmul.mubr.f32.gmra.mrb[0].mxu0 %v804
    %v937 = vpop.f32.mrb[0].mxu0
    %v938 = vadd.f32 %v745, %v937
    %v939 = vpop.f32.mrb[0].mxu0
    %940 = vmatprep.mubr.f32.mxu0 0.0
    %941 = vmatmul.mubr.f32.gmra.mrb[0].mxu0 %v807
    %v942 = vpop.f32.mrb[0].mxu0
    %v943 = vadd.f32 %v750, %v942
    %v944 = vpop.f32.mrb[0].mxu0
    %945 = vmatprep.mubr.f32.mxu0 0.0
    %946 = vmatmul.mubr.f32.gmra.mrb[0].mxu0 %v810
    %v947 = vpop.f32.mrb[0].mxu0
    %v948 = vadd.f32 %v755, %v947
    %v949 = vpop.f32.mrb[0].mxu0
    %950 = vmatprep.mubr.f32.mxu0 0.0
    %951 = vmatmul.mubr.f32.gmra.mrb[0].mxu0 %v813
    %v952 = vpop.f32.mrb[0].mxu0
    %v953 = vadd.f32 %v760, %v952
    %v954 = vpop.f32.mrb[0].mxu0
    %955 = vmatprep.mubr.f32.mxu0 0.0
    %956 = vmatmul.mubr.f32.gmra.mrb[0].mxu0 %v816
    %v957 = vpop.f32.mrb[0].mxu0
    %v958 = vadd.f32 %v765, %v957
    %v959 = vpop.f32.mrb[0].mxu0
    %960 = vmatprep.mubr.f32.mxu0 0.0
    %961 = vmatmul.mubr.f32.gmra.mrb[0].mxu0 %v819
    %v962 = vpop.f32.mrb[0].mxu0
    %v963 = vadd.f32 %v770, %v962
    %v964 = vpop.f32.mrb[0].mxu0
    %965 = vdwg.mxu0
    %v966 = vld [vmem:[%s4] sm:$0xff]
    %967 = vmatprep.subr.mxu0 0.0
    %968 = vmatpush1.xpose.msra.mxu0 %v966
    %969 = vmatprep.subr.mxu0 0.0
    %970 = vmatpush1.xpose.msra.mxu0 0.0
    %971 = vmatprep.subr.mxu0 0.0
    %972 = vmatpush1.xpose.msra.mxu0 0.0
    %973 = vmatprep.subr.mxu0 0.0
    %974 = vmatpush1.xpose.msra.mxu0 0.0
    %975 = vmatprep.subr.mxu0 0.0
    %976 = vmatpush1.xpose.msra.mxu0 0.0
    %977 = vmatprep.subr.mxu0 0.0
    %978 = vmatpush1.xpose.msra.mxu0 0.0
    %979 = vmatprep.subr.mxu0 0.0
    %980 = vmatpush1.xpose.msra.mxu0 0.0
    %981 = vmatprep.subr.mxu0 0.0
    %982 = vmatpush1.xpose.msra.mxu0 0.0
    %983 = vmatprep.subr.mxu0 0.0
    %984 = vmatpush1.xpose.msra.mxu0 0.0
    %985 = vmatprep.subr.mxu0 0.0
    %986 = vmatpush1.xpose.msra.mxu0 0.0
    %987 = vmatprep.subr.mxu0 0.0
    %988 = vmatpush1.xpose.msra.mxu0 0.0
    %989 = vmatprep.subr.mxu0 0.0
    %990 = vmatpush1.xpose.msra.mxu0 0.0
    %991 = vmatprep.subr.mxu0 0.0
    %992 = vmatpush1.xpose.msra.mxu0 0.0
    %993 = vmatprep.subr.mxu0 0.0
    %994 = vmatpush1.xpose.msra.mxu0 0.0
    %995 = vmatprep.subr.mxu0 0.0
    %996 = vmatpush1.xpose.msra.mxu0 0.0
    %997 = vmatprep.subr.mxu0 0.0
    %998 = vmatpush1.xpose.msra.mxu0 0.0
    %999 = vmatprep.subr.mxu0 0.0
    %1000 = vmatpush1.xpose.msra.mxu0 0.0
    %1001 = vmatprep.subr.mxu0 0.0
    %1002 = vmatpush1.xpose.msra.mxu0 0.0
    %1003 = vmatprep.subr.mxu0 0.0
    %1004 = vmatpush1.xpose.msra.mxu0 0.0
    %1005 = vmatprep.subr.mxu0 0.0
    %1006 = vmatpush1.xpose.msra.mxu0 0.0
    %1007 = vmatprep.subr.mxu0 0.0
    %1008 = vmatpush1.xpose.msra.mxu0 0.0
    %1009 = vmatprep.subr.mxu0 0.0
    %1010 = vmatpush1.xpose.msra.mxu0 0.0
    %1011 = vmatprep.subr.mxu0 0.0
    %1012 = vmatpush1.xpose.msra.mxu0 0.0
    %1013 = vmatprep.subr.mxu0 0.0
    %1014 = vmatpush1.xpose.msra.mxu0 0.0
    %1015 = vmatprep.subr.mxu0 0.0
    %1016 = vmatpush1.xpose.msra.mxu0 0.0
    %1017 = vmatprep.subr.mxu0 0.0
    %1018 = vmatpush1.xpose.msra.mxu0 0.0
    %1019 = vmatprep.subr.mxu0 0.0
    %1020 = vmatpush1.xpose.msra.mxu0 0.0
    %1021 = vmatprep.subr.mxu0 0.0
    %1022 = vmatpush1.xpose.msra.mxu0 0.0
    %1023 = vmatprep.subr.mxu0 0.0
    %1024 = vmatpush1.xpose.msra.mxu0 0.0
    %1025 = vmatprep.subr.mxu0 0.0
    %1026 = vmatpush1.xpose.msra.mxu0 0.0
    %1027 = vmatprep.subr.mxu0 0.0
    %1028 = vmatpush1.xpose.msra.mxu0 0.0
    %1029 = vmatprep.subr.mxu0 0.0
    %1030 = vmatpush1.xpose.msra.mxu0 0.0
    %1031 = vmatprep.mubr.f32.mxu0 0.0
    %1032 = vmatmul.mubr.f32.gmra.mrb[0].mxu0 %v888
    %v1033 = vpop.f32.mrb[0].mxu0
    %v1034 = vadd.f32 0.0, %v1033
    %v1035 = vpop.f32.mrb[0].mxu0
    %1036 = vmatprep.mubr.f32.mxu0 0.0
    %1037 = vmatmul.mubr.f32.gmra.mrb[0].mxu0 %v893
    %v1038 = vpop.f32.mrb[0].mxu0
    %v1039 = vadd.f32 0.0, %v1038
    %v1040 = vpop.f32.mrb[0].mxu0
    %1041 = vmatprep.mubr.f32.mxu0 0.0
    %1042 = vmatmul.mubr.f32.gmra.mrb[0].mxu0 %v898
    %v1043 = vpop.f32.mrb[0].mxu0
    %v1044 = vadd.f32 0.0, %v1043
    %v1045 = vpop.f32.mrb[0].mxu0
    %1046 = vmatprep.mubr.f32.mxu0 0.0
    %1047 = vmatmul.mubr.f32.gmra.mrb[0].mxu0 %v903
    %v1048 = vpop.f32.mrb[0].mxu0
    %v1049 = vadd.f32 0.0, %v1048
    %v1050 = vpop.f32.mrb[0].mxu0
    %1051 = vmatprep.mubr.f32.mxu0 0.0
    %1052 = vmatmul.mubr.f32.gmra.mrb[0].mxu0 %v908
    %v1053 = vpop.f32.mrb[0].mxu0
    %v1054 = vadd.f32 0.0, %v1053
    %v1055 = vpop.f32.mrb[0].mxu0
    %1056 = vmatprep.mubr.f32.mxu0 0.0
    %1057 = vmatmul.mubr.f32.gmra.mrb[0].mxu0 %v913
    %v1058 = vpop.f32.mrb[0].mxu0
    %v1059 = vadd.f32 0.0, %v1058
    %v1060 = vpop.f32.mrb[0].mxu0
    %1061 = vmatprep.mubr.f32.mxu0 0.0
    %1062 = vmatmul.mubr.f32.gmra.mrb[0].mxu0 %v918
    %v1063 = vpop.f32.mrb[0].mxu0
    %v1064 = vadd.f32 0.0, %v1063
    %v1065 = vpop.f32.mrb[0].mxu0
    %1066 = vmatprep.mubr.f32.mxu0 0.0
    %1067 = vmatmul.mubr.f32.gmra.mrb[0].mxu0 %v923
    %v1068 = vpop.f32.mrb[0].mxu0
    %v1069 = vadd.f32 0.0, %v1068
    %v1070 = vpop.f32.mrb[0].mxu0
    %1071 = vmatprep.mubr.f32.mxu0 0.0
    %1072 = vmatmul.mubr.f32.gmra.mrb[0].mxu0 %v928
    %v1073 = vpop.f32.mrb[0].mxu0
    %v1074 = vadd.f32 0.0, %v1073
    %v1075 = vpop.f32.mrb[0].mxu0
    %1076 = vmatprep.mubr.f32.mxu0 0.0
    %1077 = vmatmul.mubr.f32.gmra.mrb[0].mxu0 %v933
    %v1078 = vpop.f32.mrb[0].mxu0
    %v1079 = vadd.f32 0.0, %v1078
    %v1080 = vpop.f32.mrb[0].mxu0
    %1081 = vmatprep.mubr.f32.mxu0 0.0
    %1082 = vmatmul.mubr.f32.gmra.mrb[0].mxu0 %v938
    %v1083 = vpop.f32.mrb[0].mxu0
    %v1084 = vadd.f32 0.0, %v1083
    %v1085 = vpop.f32.mrb[0].mxu0
    %1086 = vmatprep.mubr.f32.mxu0 0.0
    %1087 = vmatmul.mubr.f32.gmra.mrb[0].mxu0 %v943
    %v1088 = vpop.f32.mrb[0].mxu0
    %v1089 = vadd.f32 0.0, %v1088
    %v1090 = vpop.f32.mrb[0].mxu0
    %1091 = vmatprep.mubr.f32.mxu0 0.0
    %1092 = vmatmul.mubr.f32.gmra.mrb[0].mxu0 %v948
    %v1093 = vpop.f32.mrb[0].mxu0
    %v1094 = vadd.f32 0.0, %v1093
    %v1095 = vpop.f32.mrb[0].mxu0
    %1096 = vmatprep.mubr.f32.mxu0 0.0
    %1097 = vmatmul.mubr.f32.gmra.mrb[0].mxu0 %v953
    %v1098 = vpop.f32.mrb[0].mxu0
    %v1099 = vadd.f32 0.0, %v1098
    %v1100 = vpop.f32.mrb[0].mxu0
    %1101 = vmatprep.mubr.f32.mxu0 0.0
    %1102 = vmatmul.mubr.f32.gmra.mrb[0].mxu0 %v958
    %v1103 = vpop.f32.mrb[0].mxu0
    %v1104 = vadd.f32 0.0, %v1103
    %v1105 = vpop.f32.mrb[0].mxu0
    %1106 = vmatprep.mubr.f32.mxu0 0.0
    %1107 = vmatmul.mubr.f32.gmra.mrb[0].mxu0 %v963
    %v1108 = vpop.f32.mrb[0].mxu0
    %v1109 = vadd.f32 0.0, %v1108
    %v1110 = vpop.f32.mrb[0].mxu0
    %1111 = vdwg.mxu0
    %v1112 = vld [vmem:[%s5] sm:$0x1]
    %v1113 = vmul.f32 %v1034, 2.0
    %v1114 = vmul.f32 %v1039, 2.0
    %v1115 = vmul.f32 %v1044, 2.0
    %v1116 = vmul.f32 %v1049, 2.0
    %v1117 = vmul.f32 %v1054, 2.0
    %v1118 = vmul.f32 %v1059, 2.0
    %v1119 = vmul.f32 %v1064, 2.0
    %v1120 = vmul.f32 %v1069, 2.0
    %v1121 = vmul.f32 %v1074, 2.0
    %v1122 = vmul.f32 %v1079, 2.0
    %v1123 = vmul.f32 %v1084, 2.0
    %v1124 = vmul.f32 %v1089, 2.0
    %v1125 = vmul.f32 %v1094, 2.0
    %v1126 = vmul.f32 %v1099, 2.0
    %v1127 = vmul.f32 %v1104, 2.0
    %v1128 = vmul.f32 %v1109, 2.0
    %v1130 = vlaneseq
    %v1131 = vshrl.u32 %v1130, 7
    %v1132 = vsub.s32 0, %v1131
    %v1133 = vrot.slane %v1112, %v1132
    %v1135 = vsub.f32 %v1133, %v1113
    %v1136 = vsub.f32 %v1133, %v1114
    %v1137 = vsub.f32 %v1133, %v1115
    %v1138 = vsub.f32 %v1133, %v1116
    %v1139 = vsub.f32 %v1133, %v1117
    %v1140 = vsub.f32 %v1133, %v1118
    %v1141 = vsub.f32 %v1133, %v1119
    %v1142 = vsub.f32 %v1133, %v1120
    %v1143 = vsub.f32 %v1133, %v1121
    %v1144 = vsub.f32 %v1133, %v1122
    %v1145 = vsub.f32 %v1133, %v1123
    %v1146 = vsub.f32 %v1133, %v1124
    %v1147 = vsub.f32 %v1133, %v1125
    %v1148 = vsub.f32 %v1133, %v1126
    %v1149 = vsub.f32 %v1133, %v1127
    %v1150 = vsub.f32 %v1133, %v1128
    %vm1151 = vcmask 64512
    %v1152 = vsel %vm1151, %v1135, inf
    %1153 = vmin.xlane.f32.xlu0 %v1152
    %v1154 = vpop.xlane.xlu0 %1153
    %v1155 = vsel %vm1151, %v1136, inf
    %1156 = vmin.xlane.f32.xlu0 %v1155
    %v1157 = vpop.xlane.xlu0 %1156
    %v1158 = vsel %vm1151, %v1137, inf
    %1159 = vmin.xlane.f32.xlu0 %v1158
    %v1160 = vpop.xlane.xlu0 %1159
    %v1161 = vsel %vm1151, %v1138, inf
    %1162 = vmin.xlane.f32.xlu0 %v1161
    %v1163 = vpop.xlane.xlu0 %1162
    %v1164 = vsel %vm1151, %v1139, inf
    %1165 = vmin.xlane.f32.xlu0 %v1164
    %v1166 = vpop.xlane.xlu0 %1165
    %v1167 = vsel %vm1151, %v1140, inf
    %1168 = vmin.xlane.f32.xlu0 %v1167
    %v1169 = vpop.xlane.xlu0 %1168
    %v1170 = vsel %vm1151, %v1141, inf
    %1171 = vmin.xlane.f32.xlu0 %v1170
    %v1172 = vpop.xlane.xlu0 %1171
    %v1173 = vsel %vm1151, %v1142, inf
    %1174 = vmin.xlane.f32.xlu0 %v1173
    %v1175 = vpop.xlane.xlu0 %1174
    %v1176 = vsel %vm1151, %v1143, inf
    %1177 = vmin.xlane.f32.xlu0 %v1176
    %v1178 = vpop.xlane.xlu0 %1177
    %v1179 = vsel %vm1151, %v1144, inf
    %1180 = vmin.xlane.f32.xlu0 %v1179
    %v1181 = vpop.xlane.xlu0 %1180
    %v1182 = vsel %vm1151, %v1145, inf
    %1183 = vmin.xlane.f32.xlu0 %v1182
    %v1184 = vpop.xlane.xlu0 %1183
    %v1185 = vsel %vm1151, %v1146, inf
    %1186 = vmin.xlane.f32.xlu0 %v1185
    %v1187 = vpop.xlane.xlu0 %1186
    %v1188 = vsel %vm1151, %v1147, inf
    %1189 = vmin.xlane.f32.xlu0 %v1188
    %v1190 = vpop.xlane.xlu0 %1189
    %v1191 = vsel %vm1151, %v1148, inf
    %1192 = vmin.xlane.f32.xlu0 %v1191
    %v1193 = vpop.xlane.xlu0 %1192
    %v1194 = vsel %vm1151, %v1149, inf
    %1195 = vmin.xlane.f32.xlu0 %v1194
    %v1196 = vpop.xlane.xlu0 %1195
    %v1197 = vsel %vm1151, %v1150, inf
    %1198 = vmin.xlane.f32.xlu0 %v1197
    %v1199 = vpop.xlane.xlu0 %1198
    %v1200 = vlaneseq
    %v1201 = vand.u32 %v1200, 127
    %vm1202 = vcmp.eq.f32.partialorder %v1135, %v1154
    %vm1203 = vcmp.eq.f32.partialorder %v1136, %v1157
    %vm1204 = vcmp.eq.f32.partialorder %v1137, %v1160
    %vm1205 = vcmp.eq.f32.partialorder %v1138, %v1163
    %vm1206 = vcmp.eq.f32.partialorder %v1139, %v1166
    %vm1207 = vcmp.eq.f32.partialorder %v1140, %v1169
    %vm1208 = vcmp.eq.f32.partialorder %v1141, %v1172
    %vm1209 = vcmp.eq.f32.partialorder %v1142, %v1175
    %vm1210 = vcmp.eq.f32.partialorder %v1143, %v1178
    %vm1211 = vcmp.eq.f32.partialorder %v1144, %v1181
    %vm1212 = vcmp.eq.f32.partialorder %v1145, %v1184
    %vm1213 = vcmp.eq.f32.partialorder %v1146, %v1187
    %vm1214 = vcmp.eq.f32.partialorder %v1147, %v1190
    %vm1215 = vcmp.eq.f32.partialorder %v1148, %v1193
    %vm1216 = vcmp.eq.f32.partialorder %v1149, %v1196
    %vm1217 = vcmp.eq.f32.partialorder %v1150, %v1199
    %v1218 = vsel %vm1202, %v1201, 8
    %v1219 = vsel %vm1203, %v1201, 8
    %v1220 = vsel %vm1204, %v1201, 8
    %v1221 = vsel %vm1205, %v1201, 8
    %v1222 = vsel %vm1206, %v1201, 8
    %v1223 = vsel %vm1207, %v1201, 8
    %v1224 = vsel %vm1208, %v1201, 8
    %v1225 = vsel %vm1209, %v1201, 8
    %v1226 = vsel %vm1210, %v1201, 8
    %v1227 = vsel %vm1211, %v1201, 8
    %v1228 = vsel %vm1212, %v1201, 8
    %v1229 = vsel %vm1213, %v1201, 8
    %v1230 = vsel %vm1214, %v1201, 8
    %v1231 = vsel %vm1215, %v1201, 8
    %v1232 = vsel %vm1216, %v1201, 8
    %v1233 = vsel %vm1217, %v1201, 8
    %v1234 = vsel %vm1151, %v1218, 2147483647
    %v1235 = vand.u32 %v1234, 65535
    %v1236 = vshra.s32 %v1234, 16
    %v1237 = vcvt.s32.f32 %v1235
    %v1238 = vcvt.s32.f32 %v1236
    %1239 = vmin.xlane.f32.xlu0 %v1238
    %v1240 = vpop.xlane.xlu0 %1239
    %vm1241 = vcmp.eq.f32.partialorder %v1238, %v1240
    %v1242 = vsel %vm1241, %v1237, inf
    %1243 = vmin.xlane.f32.xlu0 %v1242
    %v1244 = vpop.xlane.xlu0 %1243
    %v1245 = vcvt.f32.s32 %v1244
    %v1246 = vcvt.f32.s32 %v1240
    %v1247 = vshll.u32 %v1246, 16
    %v1248 = vadd.s32 %v1247, %v1245
    %v1249 = vsel %vm1151, %v1219, 2147483647
    %v1250 = vand.u32 %v1249, 65535
    %v1251 = vshra.s32 %v1249, 16
    %v1252 = vcvt.s32.f32 %v1250
    %v1253 = vcvt.s32.f32 %v1251
    %1254 = vmin.xlane.f32.xlu0 %v1253
    %v1255 = vpop.xlane.xlu0 %1254
    %vm1256 = vcmp.eq.f32.partialorder %v1253, %v1255
    %v1257 = vsel %vm1256, %v1252, inf
    %1258 = vmin.xlane.f32.xlu0 %v1257
    %v1259 = vpop.xlane.xlu0 %1258
    %v1260 = vcvt.f32.s32 %v1259
    %v1261 = vcvt.f32.s32 %v1255
    %v1262 = vshll.u32 %v1261, 16
    %v1263 = vadd.s32 %v1262, %v1260
    %v1264 = vsel %vm1151, %v1220, 2147483647
    %v1265 = vand.u32 %v1264, 65535
    %v1266 = vshra.s32 %v1264, 16
    %v1267 = vcvt.s32.f32 %v1265
    %v1268 = vcvt.s32.f32 %v1266
    %1269 = vmin.xlane.f32.xlu0 %v1268
    %v1270 = vpop.xlane.xlu0 %1269
    %vm1271 = vcmp.eq.f32.partialorder %v1268, %v1270
    %v1272 = vsel %vm1271, %v1267, inf
    %1273 = vmin.xlane.f32.xlu0 %v1272
    %v1274 = vpop.xlane.xlu0 %1273
    %v1275 = vcvt.f32.s32 %v1274
    %v1276 = vcvt.f32.s32 %v1270
    %v1277 = vshll.u32 %v1276, 16
    %v1278 = vadd.s32 %v1277, %v1275
    %v1279 = vsel %vm1151, %v1221, 2147483647
    %v1280 = vand.u32 %v1279, 65535
    %v1281 = vshra.s32 %v1279, 16
    %v1282 = vcvt.s32.f32 %v1280
    %v1283 = vcvt.s32.f32 %v1281
    %1284 = vmin.xlane.f32.xlu0 %v1283
    %v1285 = vpop.xlane.xlu0 %1284
    %vm1286 = vcmp.eq.f32.partialorder %v1283, %v1285
    %v1287 = vsel %vm1286, %v1282, inf
    %1288 = vmin.xlane.f32.xlu0 %v1287
    %v1289 = vpop.xlane.xlu0 %1288
    %v1290 = vcvt.f32.s32 %v1289
    %v1291 = vcvt.f32.s32 %v1285
    %v1292 = vshll.u32 %v1291, 16
    %v1293 = vadd.s32 %v1292, %v1290
    %v1294 = vsel %vm1151, %v1222, 2147483647
    %v1295 = vand.u32 %v1294, 65535
    %v1296 = vshra.s32 %v1294, 16
    %v1297 = vcvt.s32.f32 %v1295
    %v1298 = vcvt.s32.f32 %v1296
    %1299 = vmin.xlane.f32.xlu0 %v1298
    %v1300 = vpop.xlane.xlu0 %1299
    %vm1301 = vcmp.eq.f32.partialorder %v1298, %v1300
    %v1302 = vsel %vm1301, %v1297, inf
    %1303 = vmin.xlane.f32.xlu0 %v1302
    %v1304 = vpop.xlane.xlu0 %1303
    %v1305 = vcvt.f32.s32 %v1304
    %v1306 = vcvt.f32.s32 %v1300
    %v1307 = vshll.u32 %v1306, 16
    %v1308 = vadd.s32 %v1307, %v1305
    %v1309 = vsel %vm1151, %v1223, 2147483647
    %v1310 = vand.u32 %v1309, 65535
    %v1311 = vshra.s32 %v1309, 16
    %v1312 = vcvt.s32.f32 %v1310
    %v1313 = vcvt.s32.f32 %v1311
    %1314 = vmin.xlane.f32.xlu0 %v1313
    %v1315 = vpop.xlane.xlu0 %1314
    %vm1316 = vcmp.eq.f32.partialorder %v1313, %v1315
    %v1317 = vsel %vm1316, %v1312, inf
    %1318 = vmin.xlane.f32.xlu0 %v1317
    %v1319 = vpop.xlane.xlu0 %1318
    %v1320 = vcvt.f32.s32 %v1319
    %v1321 = vcvt.f32.s32 %v1315
    %v1322 = vshll.u32 %v1321, 16
    %v1323 = vadd.s32 %v1322, %v1320
    %v1324 = vsel %vm1151, %v1224, 2147483647
    %v1325 = vand.u32 %v1324, 65535
    %v1326 = vshra.s32 %v1324, 16
    %v1327 = vcvt.s32.f32 %v1325
    %v1328 = vcvt.s32.f32 %v1326
    %1329 = vmin.xlane.f32.xlu0 %v1328
    %v1330 = vpop.xlane.xlu0 %1329
    %vm1331 = vcmp.eq.f32.partialorder %v1328, %v1330
    %v1332 = vsel %vm1331, %v1327, inf
    %1333 = vmin.xlane.f32.xlu0 %v1332
    %v1334 = vpop.xlane.xlu0 %1333
    %v1335 = vcvt.f32.s32 %v1334
    %v1336 = vcvt.f32.s32 %v1330
    %v1337 = vshll.u32 %v1336, 16
    %v1338 = vadd.s32 %v1337, %v1335
    %v1339 = vsel %vm1151, %v1225, 2147483647
    %v1340 = vand.u32 %v1339, 65535
    %v1341 = vshra.s32 %v1339, 16
    %v1342 = vcvt.s32.f32 %v1340
    %v1343 = vcvt.s32.f32 %v1341
    %1344 = vmin.xlane.f32.xlu0 %v1343
    %v1345 = vpop.xlane.xlu0 %1344
    %vm1346 = vcmp.eq.f32.partialorder %v1343, %v1345
    %v1347 = vsel %vm1346, %v1342, inf
    %1348 = vmin.xlane.f32.xlu0 %v1347
    %v1349 = vpop.xlane.xlu0 %1348
    %v1350 = vcvt.f32.s32 %v1349
    %v1351 = vcvt.f32.s32 %v1345
    %v1352 = vshll.u32 %v1351, 16
    %v1353 = vadd.s32 %v1352, %v1350
    %v1354 = vsel %vm1151, %v1226, 2147483647
    %v1355 = vand.u32 %v1354, 65535
    %v1356 = vshra.s32 %v1354, 16
    %v1357 = vcvt.s32.f32 %v1355
    %v1358 = vcvt.s32.f32 %v1356
    %1359 = vmin.xlane.f32.xlu0 %v1358
    %v1360 = vpop.xlane.xlu0 %1359
    %vm1361 = vcmp.eq.f32.partialorder %v1358, %v1360
    %v1362 = vsel %vm1361, %v1357, inf
    %1363 = vmin.xlane.f32.xlu0 %v1362
    %v1364 = vpop.xlane.xlu0 %1363
    %v1365 = vcvt.f32.s32 %v1364
    %v1366 = vcvt.f32.s32 %v1360
    %v1367 = vshll.u32 %v1366, 16
    %v1368 = vadd.s32 %v1367, %v1365
    %v1369 = vsel %vm1151, %v1227, 2147483647
    %v1370 = vand.u32 %v1369, 65535
    %v1371 = vshra.s32 %v1369, 16
    %v1372 = vcvt.s32.f32 %v1370
    %v1373 = vcvt.s32.f32 %v1371
    %1374 = vmin.xlane.f32.xlu0 %v1373
    %v1375 = vpop.xlane.xlu0 %1374
    %vm1376 = vcmp.eq.f32.partialorder %v1373, %v1375
    %v1377 = vsel %vm1376, %v1372, inf
    %1378 = vmin.xlane.f32.xlu0 %v1377
    %v1379 = vpop.xlane.xlu0 %1378
    %v1380 = vcvt.f32.s32 %v1379
    %v1381 = vcvt.f32.s32 %v1375
    %v1382 = vshll.u32 %v1381, 16
    %v1383 = vadd.s32 %v1382, %v1380
    %v1384 = vsel %vm1151, %v1228, 2147483647
    %v1385 = vand.u32 %v1384, 65535
    %v1386 = vshra.s32 %v1384, 16
    %v1387 = vcvt.s32.f32 %v1385
    %v1388 = vcvt.s32.f32 %v1386
    %1389 = vmin.xlane.f32.xlu0 %v1388
    %v1390 = vpop.xlane.xlu0 %1389
    %vm1391 = vcmp.eq.f32.partialorder %v1388, %v1390
    %v1392 = vsel %vm1391, %v1387, inf
    %1393 = vmin.xlane.f32.xlu0 %v1392
    %v1394 = vpop.xlane.xlu0 %1393
    %v1395 = vcvt.f32.s32 %v1394
    %v1396 = vcvt.f32.s32 %v1390
    %v1397 = vshll.u32 %v1396, 16
    %v1398 = vadd.s32 %v1397, %v1395
    %v1399 = vsel %vm1151, %v1229, 2147483647
    %v1400 = vand.u32 %v1399, 65535
    %v1401 = vshra.s32 %v1399, 16
    %v1402 = vcvt.s32.f32 %v1400
    %v1403 = vcvt.s32.f32 %v1401
    %1404 = vmin.xlane.f32.xlu0 %v1403
    %v1405 = vpop.xlane.xlu0 %1404
    %vm1406 = vcmp.eq.f32.partialorder %v1403, %v1405
    %v1407 = vsel %vm1406, %v1402, inf
    %1408 = vmin.xlane.f32.xlu0 %v1407
    %v1409 = vpop.xlane.xlu0 %1408
    %v1410 = vcvt.f32.s32 %v1409
    %v1411 = vcvt.f32.s32 %v1405
    %v1412 = vshll.u32 %v1411, 16
    %v1413 = vadd.s32 %v1412, %v1410
    %v1414 = vsel %vm1151, %v1230, 2147483647
    %v1415 = vand.u32 %v1414, 65535
    %v1416 = vshra.s32 %v1414, 16
    %v1417 = vcvt.s32.f32 %v1415
    %v1418 = vcvt.s32.f32 %v1416
    %1419 = vmin.xlane.f32.xlu0 %v1418
    %v1420 = vpop.xlane.xlu0 %1419
    %vm1421 = vcmp.eq.f32.partialorder %v1418, %v1420
    %v1422 = vsel %vm1421, %v1417, inf
    %1423 = vmin.xlane.f32.xlu0 %v1422
    %v1424 = vpop.xlane.xlu0 %1423
    %v1425 = vcvt.f32.s32 %v1424
    %v1426 = vcvt.f32.s32 %v1420
    %v1427 = vshll.u32 %v1426, 16
    %v1428 = vadd.s32 %v1427, %v1425
    %v1429 = vsel %vm1151, %v1231, 2147483647
    %v1430 = vand.u32 %v1429, 65535
    %v1431 = vshra.s32 %v1429, 16
    %v1432 = vcvt.s32.f32 %v1430
    %v1433 = vcvt.s32.f32 %v1431
    %1434 = vmin.xlane.f32.xlu0 %v1433
    %v1435 = vpop.xlane.xlu0 %1434
    %vm1436 = vcmp.eq.f32.partialorder %v1433, %v1435
    %v1437 = vsel %vm1436, %v1432, inf
    %1438 = vmin.xlane.f32.xlu0 %v1437
    %v1439 = vpop.xlane.xlu0 %1438
    %v1440 = vcvt.f32.s32 %v1439
    %v1441 = vcvt.f32.s32 %v1435
    %v1442 = vshll.u32 %v1441, 16
    %v1443 = vadd.s32 %v1442, %v1440
    %v1444 = vsel %vm1151, %v1232, 2147483647
    %v1445 = vand.u32 %v1444, 65535
    %v1446 = vshra.s32 %v1444, 16
    %v1447 = vcvt.s32.f32 %v1445
    %v1448 = vcvt.s32.f32 %v1446
    %1449 = vmin.xlane.f32.xlu0 %v1448
    %v1450 = vpop.xlane.xlu0 %1449
    %vm1451 = vcmp.eq.f32.partialorder %v1448, %v1450
    %v1452 = vsel %vm1451, %v1447, inf
    %1453 = vmin.xlane.f32.xlu0 %v1452
    %v1454 = vpop.xlane.xlu0 %1453
    %v1455 = vcvt.f32.s32 %v1454
    %v1456 = vcvt.f32.s32 %v1450
    %v1457 = vshll.u32 %v1456, 16
    %v1458 = vadd.s32 %v1457, %v1455
    %v1459 = vsel %vm1151, %v1233, 2147483647
    %v1460 = vand.u32 %v1459, 65535
    %v1461 = vshra.s32 %v1459, 16
    %v1462 = vcvt.s32.f32 %v1460
    %v1463 = vcvt.s32.f32 %v1461
    %1464 = vmin.xlane.f32.xlu0 %v1463
    %v1465 = vpop.xlane.xlu0 %1464
    %vm1466 = vcmp.eq.f32.partialorder %v1463, %v1465
    %v1467 = vsel %vm1466, %v1462, inf
    %1468 = vmin.xlane.f32.xlu0 %v1467
    %v1469 = vpop.xlane.xlu0 %1468
    %v1470 = vcvt.f32.s32 %v1469
    %v1471 = vcvt.f32.s32 %v1465
    %v1472 = vshll.u32 %v1471, 16
    %v1473 = vadd.s32 %v1472, %v1470
    %vm1474 = vcmask 7168
    %1475 = vst.msk [vmem:[%s11] sm:$0xff] %vm1474, %v1248
    %1476 = vst.msk [vmem:[%s11 + $0x8] sm:$0xff] %vm1474, %v1263
    %1477 = vst.msk [vmem:[%s11 + $0x10] sm:$0xff] %vm1474, %v1278
    %1478 = vst.msk [vmem:[%s11 + $0x18] sm:$0xff] %vm1474, %v1293
    %1479 = vst.msk [vmem:[%s11 + $0x20] sm:$0xff] %vm1474, %v1308
    %1480 = vst.msk [vmem:[%s11 + $0x28] sm:$0xff] %vm1474, %v1323
    %1481 = vst.msk [vmem:[%s11 + $0x30] sm:$0xff] %vm1474, %v1338
    %1482 = vst.msk [vmem:[%s11 + $0x38] sm:$0xff] %vm1474, %v1353
    %1483 = vst.msk [vmem:[%s11 + $0x40] sm:$0xff] %vm1474, %v1368
    %1484 = vst.msk [vmem:[%s11 + $0x48] sm:$0xff] %vm1474, %v1383
    %1485 = vst.msk [vmem:[%s11 + $0x50] sm:$0xff] %vm1474, %v1398
    %1486 = vst.msk [vmem:[%s11 + $0x58] sm:$0xff] %vm1474, %v1413
    %1487 = vst.msk [vmem:[%s11 + $0x60] sm:$0xff] %vm1474, %v1428
    %1488 = vst.msk [vmem:[%s11 + $0x68] sm:$0xff] %vm1474, %v1443
    %1489 = vst.msk [vmem:[%s11 + $0x70] sm:$0xff] %vm1474, %v1458
    %1490 = vst.msk [vmem:[%s11 + $0x78] sm:$0xff] %vm1474, %v1473
    %v1491 = vld [vmem:[%s6] sm:$0xf]
    %v1492 = vld [vmem:[%s6 + $0x4] sm:$0xf]
    %v1493 = vld [vmem:[%s6 + $0x8] sm:$0xf]
    %v1494 = vld [vmem:[%s6 + $0xc] sm:$0xf]
    %v1495 = vld [vmem:[%s6 + $0x10] sm:$0xf]
    %v1496 = vld [vmem:[%s6 + $0x14] sm:$0xf]
    %v1497 = vld [vmem:[%s6 + $0x18] sm:$0xf]
    %v1498 = vld [vmem:[%s6 + $0x1c] sm:$0xf]
    %v1499 = vld [vmem:[%s6 + $0x20] sm:$0xf]
    %v1500 = vld [vmem:[%s6 + $0x24] sm:$0xf]
    %v1501 = vld [vmem:[%s6 + $0x28] sm:$0xf]
    %v1502 = vld [vmem:[%s6 + $0x2c] sm:$0xf]
    %v1503 = vld [vmem:[%s6 + $0x30] sm:$0xf]
    %v1504 = vld [vmem:[%s6 + $0x34] sm:$0xf]
    %v1505 = vld [vmem:[%s6 + $0x38] sm:$0xf]
    %v1506 = vld [vmem:[%s6 + $0x3c] sm:$0xf]
    %v1507 = vld [vmem:[%s7] sm:$0xf]
    %v1508 = vld [vmem:[%s7 + $0x4] sm:$0xf]
    %v1509 = vld [vmem:[%s7 + $0x8] sm:$0xf]
    %v1510 = vld [vmem:[%s7 + $0xc] sm:$0xf]
    %v1511 = vld [vmem:[%s7 + $0x10] sm:$0xf]
    %v1512 = vld [vmem:[%s7 + $0x14] sm:$0xf]
    %v1513 = vld [vmem:[%s7 + $0x18] sm:$0xf]
    %v1514 = vld [vmem:[%s7 + $0x1c] sm:$0xf]
    %v1515 = vld [vmem:[%s7 + $0x20] sm:$0xf]
    %v1516 = vld [vmem:[%s7 + $0x24] sm:$0xf]
    %v1517 = vld [vmem:[%s7 + $0x28] sm:$0xf]
    %v1518 = vld [vmem:[%s7 + $0x2c] sm:$0xf]
    %v1519 = vld [vmem:[%s7 + $0x30] sm:$0xf]
    %v1520 = vld [vmem:[%s7 + $0x34] sm:$0xf]
    %v1521 = vld [vmem:[%s7 + $0x38] sm:$0xf]
    %v1522 = vld [vmem:[%s7 + $0x3c] sm:$0xf]
    %v1523 = vld [vmem:[%s8] sm:$0x1]
    %v1525 = vlaneseq
    %v1526 = vshrl.u32 %v1525, 7
    %v1527 = vsub.s32 0, %v1526
    %v1528 = vrot.slane %v1523, %v1527
    %v1546 = vunpack.c.l.b16 %v1491
    %v1547 = vunpack.c.l.b16 %v1492
    %v1548 = vunpack.c.l.b16 %v1493
    %v1549 = vunpack.c.l.b16 %v1494
    %v1550 = vunpack.c.l.b16 %v1495
    %v1551 = vunpack.c.l.b16 %v1496
    %v1552 = vunpack.c.l.b16 %v1497
    %v1553 = vunpack.c.l.b16 %v1498
    %v1554 = vunpack.c.l.b16 %v1499
    %v1555 = vunpack.c.l.b16 %v1500
    %v1556 = vunpack.c.l.b16 %v1501
    %v1557 = vunpack.c.l.b16 %v1502
    %v1558 = vunpack.c.l.b16 %v1503
    %v1559 = vunpack.c.l.b16 %v1504
    %v1560 = vunpack.c.l.b16 %v1505
    %v1561 = vunpack.c.l.b16 %v1506
    %v1562 = vpack.c.b16 %v1547, %v1546
    %v1563 = vpack.c.b16 %v1549, %v1548
    %v1564 = vpack.c.b16 %v1551, %v1550
    %v1565 = vpack.c.b16 %v1553, %v1552
    %v1566 = vpack.c.b16 %v1555, %v1554
    %v1567 = vpack.c.b16 %v1557, %v1556
    %v1568 = vpack.c.b16 %v1559, %v1558
    %v1569 = vpack.c.b16 %v1561, %v1560
    %v1594 = vunpack.c.l.b16 %v1507
    %v1595 = vunpack.c.l.b16 %v1508
    %v1596 = vunpack.c.l.b16 %v1509
    %v1597 = vunpack.c.l.b16 %v1510
    %v1598 = vunpack.c.l.b16 %v1511
    %v1599 = vunpack.c.l.b16 %v1512
    %v1600 = vunpack.c.l.b16 %v1513
    %v1601 = vunpack.c.l.b16 %v1514
    %v1602 = vunpack.c.l.b16 %v1515
    %v1603 = vunpack.c.l.b16 %v1516
    %v1604 = vunpack.c.l.b16 %v1517
    %v1605 = vunpack.c.l.b16 %v1518
    %v1606 = vunpack.c.l.b16 %v1519
    %v1607 = vunpack.c.l.b16 %v1520
    %v1608 = vunpack.c.l.b16 %v1521
    %v1609 = vunpack.c.l.b16 %v1522
    %v1610 = vpack.c.b16 %v1595, %v1594
    %v1611 = vpack.c.b16 %v1597, %v1596
    %v1612 = vpack.c.b16 %v1599, %v1598
    %v1613 = vpack.c.b16 %v1601, %v1600
    %v1614 = vpack.c.b16 %v1603, %v1602
    %v1615 = vpack.c.b16 %v1605, %v1604
    %v1616 = vpack.c.b16 %v1607, %v1606
    %v1617 = vpack.c.b16 %v1609, %v1608
    %1626 = vmatprep.subr.bf16.mxu0 0
    %1627 = vmatpush1.bf16.msra.mxu0 %v1610
    %1628 = vmatprep.subr.bf16.mxu0 0
    %1629 = vmatpush1.bf16.msra.mxu0 %v1611
    %1630 = vmatprep.subr.bf16.mxu0 0
    %1631 = vmatpush1.bf16.msra.mxu0 %v1612
    %1632 = vmatprep.subr.bf16.mxu0 0
    %1633 = vmatpush1.bf16.msra.mxu0 %v1613
    %1634 = vmatprep.subr.bf16.mxu0 0
    %1635 = vmatpush1.bf16.msra.mxu0 %v1614
    %1636 = vmatprep.subr.bf16.mxu0 0
    %1637 = vmatpush1.bf16.msra.mxu0 %v1615
    %1638 = vmatprep.subr.bf16.mxu0 0
    %1639 = vmatpush1.bf16.msra.mxu0 %v1616
    %1640 = vmatprep.subr.bf16.mxu0 0
    %1641 = vmatpush1.bf16.msra.mxu0 %v1617
    %1642 = vmatprep.subr.bf16.mxu0 0
    %1643 = vmatpush1.bf16.msra.mxu0 0
    %1644 = vmatprep.subr.bf16.mxu0 0
    %1645 = vmatpush1.bf16.msra.mxu0 0
    %1646 = vmatprep.subr.bf16.mxu0 0
    %1647 = vmatpush1.bf16.msra.mxu0 0
    %1648 = vmatprep.subr.bf16.mxu0 0
    %1649 = vmatpush1.bf16.msra.mxu0 0
    %1650 = vmatprep.subr.bf16.mxu0 0
    %1651 = vmatpush1.bf16.msra.mxu0 0
    %1652 = vmatprep.subr.bf16.mxu0 0
    %1653 = vmatpush1.bf16.msra.mxu0 0
    %1654 = vmatprep.subr.bf16.mxu0 0
    %1655 = vmatpush1.bf16.msra.mxu0 0
    %1656 = vmatprep.subr.bf16.mxu0 0
    %1657 = vmatpush1.bf16.msra.mxu0 0
    %1658 = vmatprep.mubr.bf16.mxu0 0
    %1659 = vmatmul.mubr.bf16.gmra.mrb[0].mxu0 %v1562
    %v1660 = vpop.f32.mrb[0].mxu0
    %v1661 = vadd.f32 %v1528, %v1660
    %v1662 = vpop.f32.mrb[0].mxu0
    %v1663 = vpop.f32.mrb[0].mxu0
    %v1664 = vadd.f32 %v1528, %v1663
    %v1665 = vpop.f32.mrb[0].mxu0
    %1666 = vmatprep.mubr.bf16.mxu0 0
    %1667 = vmatmul.mubr.bf16.gmra.mrb[0].mxu0 %v1563
    %v1668 = vpop.f32.mrb[0].mxu0
    %v1669 = vadd.f32 %v1528, %v1668
    %v1670 = vpop.f32.mrb[0].mxu0
    %v1671 = vpop.f32.mrb[0].mxu0
    %v1672 = vadd.f32 %v1528, %v1671
    %v1673 = vpop.f32.mrb[0].mxu0
    %1674 = vmatprep.mubr.bf16.mxu0 0
    %1675 = vmatmul.mubr.bf16.gmra.mrb[0].mxu0 %v1564
    %v1676 = vpop.f32.mrb[0].mxu0
    %v1677 = vadd.f32 %v1528, %v1676
    %v1678 = vpop.f32.mrb[0].mxu0
    %v1679 = vpop.f32.mrb[0].mxu0
    %v1680 = vadd.f32 %v1528, %v1679
    %v1681 = vpop.f32.mrb[0].mxu0
    %1682 = vmatprep.mubr.bf16.mxu0 0
    %1683 = vmatmul.mubr.bf16.gmra.mrb[0].mxu0 %v1565
    %v1684 = vpop.f32.mrb[0].mxu0
    %v1685 = vadd.f32 %v1528, %v1684
    %v1686 = vpop.f32.mrb[0].mxu0
    %v1687 = vpop.f32.mrb[0].mxu0
    %v1688 = vadd.f32 %v1528, %v1687
    %v1689 = vpop.f32.mrb[0].mxu0
    %1690 = vmatprep.mubr.bf16.mxu0 0
    %1691 = vmatmul.mubr.bf16.gmra.mrb[0].mxu0 %v1566
    %v1692 = vpop.f32.mrb[0].mxu0
    %v1693 = vadd.f32 %v1528, %v1692
    %v1694 = vpop.f32.mrb[0].mxu0
    %v1695 = vpop.f32.mrb[0].mxu0
    %v1696 = vadd.f32 %v1528, %v1695
    %v1697 = vpop.f32.mrb[0].mxu0
    %1698 = vmatprep.mubr.bf16.mxu0 0
    %1699 = vmatmul.mubr.bf16.gmra.mrb[0].mxu0 %v1567
    %v1700 = vpop.f32.mrb[0].mxu0
    %v1701 = vadd.f32 %v1528, %v1700
    %v1702 = vpop.f32.mrb[0].mxu0
    %v1703 = vpop.f32.mrb[0].mxu0
    %v1704 = vadd.f32 %v1528, %v1703
    %v1705 = vpop.f32.mrb[0].mxu0
    %1706 = vmatprep.mubr.bf16.mxu0 0
    %1707 = vmatmul.mubr.bf16.gmra.mrb[0].mxu0 %v1568
    %v1708 = vpop.f32.mrb[0].mxu0
    %v1709 = vadd.f32 %v1528, %v1708
    %v1710 = vpop.f32.mrb[0].mxu0
    %v1711 = vpop.f32.mrb[0].mxu0
    %v1712 = vadd.f32 %v1528, %v1711
    %v1713 = vpop.f32.mrb[0].mxu0
    %1714 = vmatprep.mubr.bf16.mxu0 0
    %1715 = vmatmul.mubr.bf16.gmra.mrb[0].mxu0 %v1569
    %v1716 = vpop.f32.mrb[0].mxu0
    %v1717 = vadd.f32 %v1528, %v1716
    %v1718 = vpop.f32.mrb[0].mxu0
    %v1719 = vpop.f32.mrb[0].mxu0
    %v1720 = vadd.f32 %v1528, %v1719
    %v1721 = vpop.f32.mrb[0].mxu0
    %1722 = vdwg.mxu0
    %v1723 = vpack.c.bf16 %v1664, %v1661
    %v1724 = vpack.c.bf16 %v1672, %v1669
    %v1725 = vpack.c.bf16 %v1680, %v1677
    %v1726 = vpack.c.bf16 %v1688, %v1685
    %v1727 = vpack.c.bf16 %v1696, %v1693
    %v1728 = vpack.c.bf16 %v1704, %v1701
    %v1729 = vpack.c.bf16 %v1712, %v1709
    %v1730 = vpack.c.bf16 %v1720, %v1717
    %v1731 = vld [vmem:[%s9] sm:$0xf]
    %v1732 = vld [vmem:[%s9 + $0x4] sm:$0xf]
    %v1733 = vld [vmem:[%s9 + $0x8] sm:$0xf]
    %v1734 = vld [vmem:[%s9 + $0xc] sm:$0xf]
    %v1735 = vld [vmem:[%s9 + $0x10] sm:$0xf]
    %v1736 = vld [vmem:[%s9 + $0x14] sm:$0xf]
    %v1737 = vld [vmem:[%s9 + $0x18] sm:$0xf]
    %v1738 = vld [vmem:[%s9 + $0x1c] sm:$0xf]
    %v1739 = vld [vmem:[%s9 + $0x20] sm:$0xf]
    %v1740 = vld [vmem:[%s9 + $0x24] sm:$0xf]
    %v1741 = vld [vmem:[%s9 + $0x28] sm:$0xf]
    %v1742 = vld [vmem:[%s9 + $0x2c] sm:$0xf]
    %v1743 = vld [vmem:[%s9 + $0x30] sm:$0xf]
    %v1744 = vld [vmem:[%s9 + $0x34] sm:$0xf]
    %v1745 = vld [vmem:[%s9 + $0x38] sm:$0xf]
    %v1746 = vld [vmem:[%s9 + $0x3c] sm:$0xf]
    %v1747 = vld [vmem:[%s10] sm:$0x1]
    %v1749 = vlaneseq
    %v1750 = vshrl.u32 %v1749, 7
    %v1751 = vsub.s32 0, %v1750
    %v1752 = vrot.slane %v1747, %v1751
    %v1770 = vunpack.c.l.b16 %v1731
    %v1771 = vunpack.c.l.b16 %v1732
    %v1772 = vunpack.c.l.b16 %v1733
    %v1773 = vunpack.c.l.b16 %v1734
    %v1774 = vunpack.c.l.b16 %v1735
    %v1775 = vunpack.c.l.b16 %v1736
    %v1776 = vunpack.c.l.b16 %v1737
    %v1777 = vunpack.c.l.b16 %v1738
    %v1778 = vunpack.c.l.b16 %v1739
    %v1779 = vunpack.c.l.b16 %v1740
    %v1780 = vunpack.c.l.b16 %v1741
    %v1781 = vunpack.c.l.b16 %v1742
    %v1782 = vunpack.c.l.b16 %v1743
    %v1783 = vunpack.c.l.b16 %v1744
    %v1784 = vunpack.c.l.b16 %v1745
    %v1785 = vunpack.c.l.b16 %v1746
    %v1786 = vpack.c.b16 %v1771, %v1770
    %v1787 = vpack.c.b16 %v1773, %v1772
    %v1788 = vpack.c.b16 %v1775, %v1774
    %v1789 = vpack.c.b16 %v1777, %v1776
    %v1790 = vpack.c.b16 %v1779, %v1778
    %v1791 = vpack.c.b16 %v1781, %v1780
    %v1792 = vpack.c.b16 %v1783, %v1782
    %v1793 = vpack.c.b16 %v1785, %v1784
    %1802 = vmatprep.subr.bf16.mxu0 0
    %1803 = vmatpush1.bf16.msra.mxu0 %v1786
    %1804 = vmatprep.subr.bf16.mxu0 0
    %1805 = vmatpush1.bf16.msra.mxu0 %v1787
    %1806 = vmatprep.subr.bf16.mxu0 0
    %1807 = vmatpush1.bf16.msra.mxu0 %v1788
    %1808 = vmatprep.subr.bf16.mxu0 0
    %1809 = vmatpush1.bf16.msra.mxu0 %v1789
    %1810 = vmatprep.subr.bf16.mxu0 0
    %1811 = vmatpush1.bf16.msra.mxu0 %v1790
    %1812 = vmatprep.subr.bf16.mxu0 0
    %1813 = vmatpush1.bf16.msra.mxu0 %v1791
    %1814 = vmatprep.subr.bf16.mxu0 0
    %1815 = vmatpush1.bf16.msra.mxu0 %v1792
    %1816 = vmatprep.subr.bf16.mxu0 0
    %1817 = vmatpush1.bf16.msra.mxu0 %v1793
    %1818 = vmatprep.subr.bf16.mxu0 0
    %1819 = vmatpush1.bf16.msra.mxu0 0
    %1820 = vmatprep.subr.bf16.mxu0 0
    %1821 = vmatpush1.bf16.msra.mxu0 0
    %1822 = vmatprep.subr.bf16.mxu0 0
    %1823 = vmatpush1.bf16.msra.mxu0 0
    %1824 = vmatprep.subr.bf16.mxu0 0
    %1825 = vmatpush1.bf16.msra.mxu0 0
    %1826 = vmatprep.subr.bf16.mxu0 0
    %1827 = vmatpush1.bf16.msra.mxu0 0
    %1828 = vmatprep.subr.bf16.mxu0 0
    %1829 = vmatpush1.bf16.msra.mxu0 0
    %1830 = vmatprep.subr.bf16.mxu0 0
    %1831 = vmatpush1.bf16.msra.mxu0 0
    %1832 = vmatprep.subr.bf16.mxu0 0
    %1833 = vmatpush1.bf16.msra.mxu0 0
    %1834 = vmatprep.mubr.bf16.mxu0 0
    %1835 = vmatmul.mubr.bf16.gmra.mrb[0].mxu0 %v1723
    %v1836 = vpop.f32.mrb[0].mxu0
    %v1837 = vadd.f32 %v1752, %v1836
    %v1838 = vpop.f32.mrb[0].mxu0
    %v1839 = vpop.f32.mrb[0].mxu0
    %v1840 = vadd.f32 %v1752, %v1839
    %v1841 = vpop.f32.mrb[0].mxu0
    %1842 = vmatprep.mubr.bf16.mxu0 0
    %1843 = vmatmul.mubr.bf16.gmra.mrb[0].mxu0 %v1724
    %v1844 = vpop.f32.mrb[0].mxu0
    %v1845 = vadd.f32 %v1752, %v1844
    %v1846 = vpop.f32.mrb[0].mxu0
    %v1847 = vpop.f32.mrb[0].mxu0
    %v1848 = vadd.f32 %v1752, %v1847
    %v1849 = vpop.f32.mrb[0].mxu0
    %1850 = vmatprep.mubr.bf16.mxu0 0
    %1851 = vmatmul.mubr.bf16.gmra.mrb[0].mxu0 %v1725
    %v1852 = vpop.f32.mrb[0].mxu0
    %v1853 = vadd.f32 %v1752, %v1852
    %v1854 = vpop.f32.mrb[0].mxu0
    %v1855 = vpop.f32.mrb[0].mxu0
    %v1856 = vadd.f32 %v1752, %v1855
    %v1857 = vpop.f32.mrb[0].mxu0
    %1858 = vmatprep.mubr.bf16.mxu0 0
    %1859 = vmatmul.mubr.bf16.gmra.mrb[0].mxu0 %v1726
    %v1860 = vpop.f32.mrb[0].mxu0
    %v1861 = vadd.f32 %v1752, %v1860
    %v1862 = vpop.f32.mrb[0].mxu0
    %v1863 = vpop.f32.mrb[0].mxu0
    %v1864 = vadd.f32 %v1752, %v1863
    %v1865 = vpop.f32.mrb[0].mxu0
    %1866 = vmatprep.mubr.bf16.mxu0 0
    %1867 = vmatmul.mubr.bf16.gmra.mrb[0].mxu0 %v1727
    %v1868 = vpop.f32.mrb[0].mxu0
    %v1869 = vadd.f32 %v1752, %v1868
    %v1870 = vpop.f32.mrb[0].mxu0
    %v1871 = vpop.f32.mrb[0].mxu0
    %v1872 = vadd.f32 %v1752, %v1871
    %v1873 = vpop.f32.mrb[0].mxu0
    %1874 = vmatprep.mubr.bf16.mxu0 0
    %1875 = vmatmul.mubr.bf16.gmra.mrb[0].mxu0 %v1728
    %v1876 = vpop.f32.mrb[0].mxu0
    %v1877 = vadd.f32 %v1752, %v1876
    %v1878 = vpop.f32.mrb[0].mxu0
    %v1879 = vpop.f32.mrb[0].mxu0
    %v1880 = vadd.f32 %v1752, %v1879
    %v1881 = vpop.f32.mrb[0].mxu0
    %1882 = vmatprep.mubr.bf16.mxu0 0
    %1883 = vmatmul.mubr.bf16.gmra.mrb[0].mxu0 %v1729
    %v1884 = vpop.f32.mrb[0].mxu0
    %v1885 = vadd.f32 %v1752, %v1884
    %v1886 = vpop.f32.mrb[0].mxu0
    %v1887 = vpop.f32.mrb[0].mxu0
    %v1888 = vadd.f32 %v1752, %v1887
    %v1889 = vpop.f32.mrb[0].mxu0
    %1890 = vmatprep.mubr.bf16.mxu0 0
    %1891 = vmatmul.mubr.bf16.gmra.mrb[0].mxu0 %v1730
    %v1892 = vpop.f32.mrb[0].mxu0
    %v1893 = vadd.f32 %v1752, %v1892
    %v1894 = vpop.f32.mrb[0].mxu0
    %v1895 = vpop.f32.mrb[0].mxu0
    %v1896 = vadd.f32 %v1752, %v1895
    %v1897 = vpop.f32.mrb[0].mxu0
    %1898 = vdwg.mxu0
    %1899 = vst [vmem:[#allocation2] sm:$0xff] %v1837
    %1900 = vst [vmem:[#allocation2 + $0x8] sm:$0xff] %v1840
    %1901 = vst [vmem:[#allocation2 + $0x10] sm:$0xff] %v1845
    %1902 = vst [vmem:[#allocation2 + $0x18] sm:$0xff] %v1848
    %1903 = vst [vmem:[#allocation2 + $0x20] sm:$0xff] %v1853
    %1904 = vst [vmem:[#allocation2 + $0x28] sm:$0xff] %v1856
    %1905 = vst [vmem:[#allocation2 + $0x30] sm:$0xff] %v1861
    %1906 = vst [vmem:[#allocation2 + $0x38] sm:$0xff] %v1864
    %1907 = vst [vmem:[#allocation2 + $0x40] sm:$0xff] %v1869
    %1908 = vst [vmem:[#allocation2 + $0x48] sm:$0xff] %v1872
    %1909 = vst [vmem:[#allocation2 + $0x50] sm:$0xff] %v1877
    %1910 = vst [vmem:[#allocation2 + $0x58] sm:$0xff] %v1880
    %1911 = vst [vmem:[#allocation2 + $0x60] sm:$0xff] %v1885
    %1912 = vst [vmem:[#allocation2 + $0x68] sm:$0xff] %v1888
    %1913 = vst [vmem:[#allocation2 + $0x70] sm:$0xff] %v1893
    %1914 = vst [vmem:[#allocation2 + $0x78] sm:$0xff] %v1896
    // Predicated region
    $region46: #{tpu_custom_call.1} parent=1 // pred_check
      _
    $region47: #{tpu_custom_call.1} parent=1 // pred_check_branch
      %1916 = sbr.rel (0) target = $region49
    $region48: #{tpu_custom_call.1} parent=1 // pred_region
      _
    $region49: #{tpu_custom_call.1} parent=1 // pred_fallthru
      _
    // Predicated region
    $region50: #{tpu_custom_call.1} parent=1 // pred_check
      _
    $region51: #{tpu_custom_call.1} parent=1 // pred_check_branch
      %1918 = sbr.rel (0) target = $region53
    $region52: #{tpu_custom_call.1} parent=1 // pred_region
      %s1920 = ssub.s32 2048, 2048
      %1921 = vsyncadd [#allocation3], %s1920
      %s1922 = sshll.u32 [#allocation2], 4
      %s1923 = int_to_ptr.vmem [resolvable:$true] %s1922
      %1928 = dma.vmem_to_hbm [thread:$0]  %s1923, 2048, %s12, [#allocation3], 128, 128, 8
    $region53: #{tpu_custom_call.1} parent=1 // pred_fallthru
      _
    // Predicated region
    $region54: #{tpu_custom_call.1} parent=1 // pred_check
      _
    $region55: #{tpu_custom_call.1} parent=1 // pred_check_branch
      %1930 = sbr.rel (0) target = $region57
    $region56: #{tpu_custom_call.1} parent=1 // pred_region
      _
    $region57: #{tpu_custom_call.1} parent=1 // pred_fallthru
      _
    // Predicated region
    $region58: #{tpu_custom_call.1} parent=1 // pred_check
      _
    $region59: #{tpu_custom_call.1} parent=1 // pred_check_branch
      %1932 = sbr.rel (0) target = $region61
    $region60: #{tpu_custom_call.1} parent=1 // pred_region
      %1933 = dma.done [#allocation3], 2048
    $region61: #{tpu_custom_call.1} parent=1 // pred_fallthru
      _
    %1934 = vsyncpa [#allocation3], 1

</llo_original>
